<compile_context>
chip_gen: v5e
topology: v5e:2x2
jax: 0.10.0
libtpu: 0.0.40
codegen_flags: <defaults>
</compile_context>

<pallas_src>
import math

import jax
import jax.numpy as jnp
from jax.experimental import pallas as pl
from jax.experimental.pallas import tpu as pltpu

# ----------------------- model hyper-parameters (small) -----------------------
PATCH = 4
HIDDEN = 32
NHEADS = 4
HEAD_DIM = HIDDEN // NHEADS
MLP_DIM = 64
NLAYERS = 2
FEAT_DIM = 512          # MedCLIP projection head output dim (self.feat_dim = 512)
LN_EPS = 1e-5

PARAM_ORDER = (
    "patch_w", "patch_b", "pos_emb",
    "ln1_g", "ln1_b", "qkv_w", "qkv_b", "proj_w", "proj_b",
    "ln2_g", "ln2_b", "fc1_w", "fc1_b", "fc2_w", "fc2_b",
    "lnf_g", "lnf_b", "proj_head_w",
)


# ============================ fused Pallas kernel =============================

def _ln(x, g, b):
    mu = jnp.mean(x, axis=-1, keepdims=True)
    xc = x - mu
    var = jnp.mean(xc * xc, axis=-1, keepdims=True)
    return xc * jax.lax.rsqrt(var + LN_EPS) * g + b


def _gelu(y):
    # TODO(synk): PyTorch nn.GELU defaults to the exact erf form; tanh approx kept
    # to avoid relying on erf lowering inside Mosaic (difference is ~1e-3 relative).
    c = math.sqrt(2.0 / math.pi)
    return 0.5 * y * (1.0 + jnp.tanh(c * (y + 0.044715 * y * y * y)))


def _medclip_fused_kernel(
    patches_ref,                                   # (T, P*P*C)  T = TB*S token rows
    patch_w_ref, patch_b_ref, pos_ref,             # patch embed + positional emb
    ln1_g_ref, ln1_b_ref,                          # (L, 1, D)
    qkv_w_ref, qkv_b_ref,                          # (L, D, 3*H*Dh) / (L, 1, 3*H*Dh)
    proj_w_ref, proj_b_ref,                        # (L, H*Dh, D)   / (L, 1, D)
    ln2_g_ref, ln2_b_ref,                          # (L, 1, D)
    fc1_w_ref, fc1_b_ref, fc2_w_ref, fc2_b_ref,    # MLP
    lnf_g_ref, lnf_b_ref,                          # final LN
    head_w_ref,                                    # (D, FEAT_DIM) bias-free head
    out_ref,                                       # (TB, FEAT_DIM)
):
    T = patches_ref.shape[0]
    S = pos_ref.shape[0]
    TB = T // S                                    # images fused into this grid step
    D = HIDDEN
    HD = NHEADS * HEAD_DIM                         # == D

    # ---- patch embedding ("conv" with kernel == stride == patch) ----
    x = jnp.dot(patches_ref[...], patch_w_ref[...],
                preferred_element_type=jnp.float32)               # (T, D)
    pos = pos_ref[...] if TB == 1 else jnp.tile(pos_ref[...], (TB, 1))
    x = x + patch_b_ref[...] + pos

    # block-diagonal attention bias: tokens only attend within their own image.
    if TB > 1:
        ri = jax.lax.broadcasted_iota(jnp.int32, (T, T), 0) // S
        ci = jax.lax.broadcasted_iota(jnp.int32, (T, T), 1) // S
        attn_bias = jnp.where(ri == ci, 0.0, -1e30).astype(jnp.float32)

    # ---- transformer blocks (static unrolled; everything VMEM resident) ----
    for l in range(NLAYERS):
        # multi-head self-attention (pre-LN); 1/sqrt(Dh) is folded into Q weights.
        h1 = _ln(x, ln1_g_ref[l], ln1_b_ref[l])                   # (T, D)
        qkv = jnp.dot(h1, qkv_w_ref[l],
                      preferred_element_type=jnp.float32) + qkv_b_ref[l]   # (T, 96)
        o_heads = []
        for hd_i in range(NHEADS):
            qo = hd_i * HEAD_DIM
            ko = HD + hd_i * HEAD_DIM
            vo = 2 * HD + hd_i * HEAD_DIM
            q = qkv[:, qo:qo + HEAD_DIM]                          # (T, Dh)
            k = qkv[:, ko:ko + HEAD_DIM]
            v = qkv[:, vo:vo + HEAD_DIM]
            s = jax.lax.dot_general(q, k, (((1,), (1,)), ((), ())),
                                    preferred_element_type=jnp.float32)    # (T, T)
            if TB > 1:
                s = s + attn_bias
            m = jnp.max(s, axis=-1, keepdims=True)
            e = jnp.exp(s - m)
            p = e * pl.reciprocal(jnp.sum(e, axis=-1, keepdims=True), approx=True)
            o_heads.append(jnp.dot(p, v, preferred_element_type=jnp.float32))
        o_cat = jnp.concatenate(o_heads, axis=-1)                 # (T, H*Dh)
        attn_out = jnp.dot(o_cat, proj_w_ref[l],
                           preferred_element_type=jnp.float32) + proj_b_ref[l]
        x = x + attn_out

        # MLP block (pre-LN, GELU)
        h2 = _ln(x, ln2_g_ref[l], ln2_b_ref[l])
        h2 = _gelu(jnp.dot(h2, fc1_w_ref[l],
                           preferred_element_type=jnp.float32) + fc1_b_ref[l])
        h2 = jnp.dot(h2, fc2_w_ref[l],
                     preferred_element_type=jnp.float32) + fc2_b_ref[l]
        x = x + h2

    # ---- final LN, per-image mean-pooled embedding, bias-free projection head ----
    x = _ln(x, lnf_g_ref[...], lnf_b_ref[...])                    # (T, D)
    if TB == 1:
        pooled = jnp.mean(x, axis=0, keepdims=True)               # (1, D)
    else:
        img = jax.lax.broadcasted_iota(jnp.int32, (TB, T), 0)
        tok_img = jax.lax.broadcasted_iota(jnp.int32, (TB, T), 1) // S
        pool_mat = jnp.where(img == tok_img, 1.0 / S, 0.0).astype(jnp.float32)
        pooled = jnp.dot(pool_mat, x, preferred_element_type=jnp.float32)  # (TB, D)
    out_ref[...] = jnp.dot(pooled, head_w_ref[...],
                           preferred_element_type=jnp.float32)    # (TB, FEAT_DIM)


# =========================== parameters & forward =============================

def init_params(key, in_channels=3, img_size=16):
    """Randomly initialized stand-in weights (MedCLIP's from_pretrained needs file
    I/O, which is out of scope here).  Weights are pre-stacked per layer and stored
    lane-dense so the fused kernel only does leading-dim ref indexing + lane slices."""
    patch_dim = in_channels * PATCH * PATCH
    num_patches = (img_size // PATCH) ** 2
    L, D, Dh, H = NLAYERS, HIDDEN, HEAD_DIM, NHEADS
    keys = iter(jax.random.split(key, 32))

    def nrm(shape, scale=0.02):
        return (scale * jax.random.normal(next(keys), shape)).astype(jnp.float32)

    # fused QKV linear, lanes ordered [q(h0..h3) | k(h0..h3) | v(h0..h3)], 8 each.
    qkv_w = nrm((L, D, 3 * H * Dh))
    qkv_b = jnp.zeros((L, 1, 3 * H * Dh), jnp.float32)
    # fold the 1/sqrt(head_dim) attention scale into the Q weights/bias.
    scale = 1.0 / math.sqrt(Dh)
    qkv_w = qkv_w.at[:, :, : H * Dh].multiply(scale)
    qkv_b = qkv_b.at[:, :, : H * Dh].multiply(scale)

    return {
        # patch_w rows follow the (C, P, P) flatten order used by the wrapper.
        "patch_w": nrm((patch_dim, D)),
        "patch_b": jnp.zeros((1, D), jnp.float32),
        "pos_emb": nrm((num_patches, D)),
        "ln1_g": jnp.ones((L, 1, D), jnp.float32),
        "ln1_b": jnp.zeros((L, 1, D), jnp.float32),
        "qkv_w": qkv_w,
        "qkv_b": qkv_b,
        # attention output projection; rows ordered to match the head-concat order.
        "proj_w": nrm((L, H * Dh, D)),
        "proj_b": jnp.zeros((L, 1, D), jnp.float32),
        "ln2_g": jnp.ones((L, 1, D), jnp.float32),
        "ln2_b": jnp.zeros((L, 1, D), jnp.float32),
        "fc1_w": nrm((L, D, MLP_DIM)),
        "fc1_b": jnp.zeros((L, 1, MLP_DIM), jnp.float32),
        "fc2_w": nrm((L, MLP_DIM, D)),
        "fc2_b": jnp.zeros((L, 1, D), jnp.float32),
        "lnf_g": jnp.ones((1, D), jnp.float32),
        "lnf_b": jnp.zeros((1, D), jnp.float32),
        # MedCLIP projection head: Linear(hidden, feat_dim=512, bias=False)
        "proj_head_w": nrm((D, FEAT_DIM)),
    }


def _pick_images_per_step(batch, tokens_per_image, max_rows=128):
    """Largest TB that divides `batch`, keeps TB*S <= 128 rows (one MXU row tile),
    and leaves >= 2 grid steps when batch >= 2 (keeps both v7x TensorCores busy)."""
    best = 1
    for tb in range(1, batch + 1):
        if batch % tb:
            continue
        if tb * tokens_per_image > max_rows:
            continue
        if batch >= 2 and batch // tb < 2:
            continue
        best = tb
    return best


def medclip_forward(images, params):
    """MedCLIP.forward(images) -> vision embeddings [B, FEAT_DIM].

    images: NCHW float32 (PyTorch input convention). Returns un-normalized image
    embeddings (normalization only happens in encode_image / forward_clip).
    """
    B, C, H, W = images.shape
    P = PATCH
    Hp, Wp = H // P, W // P
    S = Hp * Wp
    PD = C * P * P

    # --- host-side glue kept to a single transpose: NCHW -> (C,P,P)-ordered tokens ---
    x = images.reshape(B, C, Hp, P, Wp, P)
    patches = jnp.transpose(x, (0, 2, 4, 1, 3, 5)).reshape(B, S, PD).astype(jnp.float32)

    TB = _pick_images_per_step(B, S)       # images fused per grid step
    steps = B // TB
    T = TB * S
    patches = patches.reshape(steps, T, PD)

    def full_spec(arr):
        nd = arr.ndim
        return pl.BlockSpec(arr.shape, lambda b, _nd=nd: (0,) * _nd)

    weight_args = [params[k] for k in PARAM_ORDER]
    in_specs = ([pl.BlockSpec((None, T, PD), lambda b: (b, 0, 0))] +
                [full_spec(a) for a in weight_args])

    out = pl.pallas_call(
        _medclip_fused_kernel,
        out_shape=jax.ShapeDtypeStruct((steps, TB, FEAT_DIM), jnp.float32),
        grid=(steps,),
        in_specs=in_specs,
        # lane-dense (TB, 512) output tile per grid step
        out_specs=pl.BlockSpec((None, TB, FEAT_DIM), lambda b: (b, 0, 0)),
        compiler_params=pltpu.CompilerParams(
            dimension_semantics=("parallel",)),   # shards steps across TCs on v7x
    )(patches, *weight_args)

    return out.reshape(B, FEAT_DIM)


# ==================================== main ====================================

if __name__ == "__main__":
    key = jax.random.PRNGKey(0)
    k_img, k_par = jax.random.split(key)

    B, C, H, W = 2, 3, 16, 16
    images = jax.random.normal(k_img, (B, C, H, W), dtype=jnp.float32)  # NCHW
    params = init_params(k_par, in_channels=C, img_size=H)

    fwd = jax.jit(medclip_forward)
    out = jax.block_until_ready(fwd(images, params))

    assert out.shape == (B, FEAT_DIM), out.shape
    assert bool(jnp.all(jnp.isfinite(out)))
    print("KERNEL_OK")
</pallas_src>

<mosaic_0001>
module attributes {stable_mosaic.version = 11 : i64} {
  func.func @_medclip_fused_kernel(%arg0: i32, %arg1: memref<1x16x48xf32, #tpu.memory_space<vmem>>, %arg2: memref<48x32xf32, #tpu.memory_space<vmem>>, %arg3: memref<1x32xf32, #tpu.memory_space<vmem>>, %arg4: memref<16x32xf32, #tpu.memory_space<vmem>>, %arg5: memref<2x1x32xf32, #tpu.memory_space<vmem>>, %arg6: memref<2x1x32xf32, #tpu.memory_space<vmem>>, %arg7: memref<2x32x96xf32, #tpu.memory_space<vmem>>, %arg8: memref<2x1x96xf32, #tpu.memory_space<vmem>>, %arg9: memref<2x32x32xf32, #tpu.memory_space<vmem>>, %arg10: memref<2x1x32xf32, #tpu.memory_space<vmem>>, %arg11: memref<2x1x32xf32, #tpu.memory_space<vmem>>, %arg12: memref<2x1x32xf32, #tpu.memory_space<vmem>>, %arg13: memref<2x32x64xf32, #tpu.memory_space<vmem>>, %arg14: memref<2x1x64xf32, #tpu.memory_space<vmem>>, %arg15: memref<2x64x32xf32, #tpu.memory_space<vmem>>, %arg16: memref<2x1x32xf32, #tpu.memory_space<vmem>>, %arg17: memref<1x32xf32, #tpu.memory_space<vmem>>, %arg18: memref<1x32xf32, #tpu.memory_space<vmem>>, %arg19: memref<32x512xf32, #tpu.memory_space<vmem>>, %arg20: memref<1x1x512xf32, #tpu.memory_space<vmem>>) attributes {dimension_semantics = [#tpu.dimension_semantics<parallel>], iteration_bounds = array<i64: 2>, scalar_prefetch = 0 : i64, scratch_operands = 0 : i64, tpu.core_type = #tpu.core_type<tc>, window_params = [{transform_indices = @transform_0, window_bounds = array<i64: 1, 16, 48>}, {pipeline_mode = #tpu.pipeline_mode<synchronous>, transform_indices = @transform_1, window_bounds = array<i64: 48, 32>}, {pipeline_mode = #tpu.pipeline_mode<synchronous>, transform_indices = @transform_2, window_bounds = array<i64: 1, 32>}, {pipeline_mode = #tpu.pipeline_mode<synchronous>, transform_indices = @transform_3, window_bounds = array<i64: 16, 32>}, {pipeline_mode = #tpu.pipeline_mode<synchronous>, transform_indices = @transform_4, window_bounds = array<i64: 2, 1, 32>}, {pipeline_mode = #tpu.pipeline_mode<synchronous>, transform_indices = @transform_5, window_bounds = array<i64: 2, 1, 32>}, {pipeline_mode = #tpu.pipeline_mode<synchronous>, transform_indices = @transform_6, window_bounds = array<i64: 2, 32, 96>}, {pipeline_mode = #tpu.pipeline_mode<synchronous>, transform_indices = @transform_7, window_bounds = array<i64: 2, 1, 96>}, {pipeline_mode = #tpu.pipeline_mode<synchronous>, transform_indices = @transform_8, window_bounds = array<i64: 2, 32, 32>}, {pipeline_mode = #tpu.pipeline_mode<synchronous>, transform_indices = @transform_9, window_bounds = array<i64: 2, 1, 32>}, {pipeline_mode = #tpu.pipeline_mode<synchronous>, transform_indices = @transform_10, window_bounds = array<i64: 2, 1, 32>}, {pipeline_mode = #tpu.pipeline_mode<synchronous>, transform_indices = @transform_11, window_bounds = array<i64: 2, 1, 32>}, {pipeline_mode = #tpu.pipeline_mode<synchronous>, transform_indices = @transform_12, window_bounds = array<i64: 2, 32, 64>}, {pipeline_mode = #tpu.pipeline_mode<synchronous>, transform_indices = @transform_13, window_bounds = array<i64: 2, 1, 64>}, {pipeline_mode = #tpu.pipeline_mode<synchronous>, transform_indices = @transform_14, window_bounds = array<i64: 2, 64, 32>}, {pipeline_mode = #tpu.pipeline_mode<synchronous>, transform_indices = @transform_15, window_bounds = array<i64: 2, 1, 32>}, {pipeline_mode = #tpu.pipeline_mode<synchronous>, transform_indices = @transform_16, window_bounds = array<i64: 1, 32>}, {pipeline_mode = #tpu.pipeline_mode<synchronous>, transform_indices = @transform_17, window_bounds = array<i64: 1, 32>}, {pipeline_mode = #tpu.pipeline_mode<synchronous>, transform_indices = @transform_18, window_bounds = array<i64: 32, 512>}, {transform_indices = @transform_19, window_bounds = array<i64: 1, 1, 512>}]} {
    %c0 = arith.constant 0 : index
    %c0_0 = arith.constant 0 : index
    %c0_1 = arith.constant 0 : index
    %0 = vector.load %arg1[%c0, %c0_0, %c0_1] : memref<1x16x48xf32, #tpu.memory_space<vmem>>, vector<1x16x48xf32>
    %1 = vector.shape_cast %0 : vector<1x16x48xf32> to vector<16x48xf32>
    %c0_2 = arith.constant 0 : index
    %c0_3 = arith.constant 0 : index
    %2 = vector.load %arg2[%c0_2, %c0_3] : memref<48x32xf32, #tpu.memory_space<vmem>>, vector<48x32xf32>
    %cst = arith.constant dense<0.000000e+00> : vector<16x32xf32>
    %3 = tpu.matmul %1, %2, %cst {dimension_numbers = #tpu.dot_dimension_numbers<[1], [0], [0], [1], [0, 0, 1, 1], [], []>} : vector<16x48xf32>, vector<48x32xf32>, vector<16x32xf32> -> vector<16x32xf32>
    %c0_4 = arith.constant 0 : index
    %c0_5 = arith.constant 0 : index
    %4 = vector.load %arg4[%c0_4, %c0_5] : memref<16x32xf32, #tpu.memory_space<vmem>>, vector<16x32xf32>
    %c0_6 = arith.constant 0 : index
    %c0_7 = arith.constant 0 : index
    %5 = vector.load %arg3[%c0_6, %c0_7] : memref<1x32xf32, #tpu.memory_space<vmem>>, vector<1x32xf32>
    %6 = vector.broadcast %5 : vector<1x32xf32> to vector<16x32xf32>
    %7 = arith.addf %3, %6 : vector<16x32xf32>
    %8 = arith.addf %7, %4 : vector<16x32xf32>
    %c0_8 = arith.constant 0 : index
    %c0_9 = arith.constant 0 : index
    %c0_10 = arith.constant 0 : index
    %9 = vector.load %arg5[%c0_8, %c0_9, %c0_10] : memref<2x1x32xf32, #tpu.memory_space<vmem>>, vector<1x1x32xf32>
    %10 = vector.shape_cast %9 : vector<1x1x32xf32> to vector<1x32xf32>
    %c0_11 = arith.constant 0 : index
    %c0_12 = arith.constant 0 : index
    %c0_13 = arith.constant 0 : index
    %11 = vector.load %arg6[%c0_11, %c0_12, %c0_13] : memref<2x1x32xf32, #tpu.memory_space<vmem>>, vector<1x1x32xf32>
    %12 = vector.shape_cast %11 : vector<1x1x32xf32> to vector<1x32xf32>
    %cst_14 = arith.constant dense<0.000000e+00> : vector<16xf32>
    %13 = vector.multi_reduction <add>, %8, %cst_14 [1] : vector<16x32xf32> to vector<16xf32>
    %14 = vector.shape_cast %13 : vector<16xf32> to vector<16x1xf32>
    %cst_15 = arith.constant 3.200000e+01 : f32
    %15 = vector.broadcast %cst_15 : f32 to vector<16x1xf32>
    %16 = arith.divf %14, %15 : vector<16x1xf32>
    %17 = vector.broadcast %16 : vector<16x1xf32> to vector<16x32xf32>
    %18 = arith.subf %8, %17 : vector<16x32xf32>
    %19 = arith.mulf %18, %18 : vector<16x32xf32>
    %cst_16 = arith.constant dense<0.000000e+00> : vector<16xf32>
    %20 = vector.multi_reduction <add>, %19, %cst_16 [1] : vector<16x32xf32> to vector<16xf32>
    %21 = vector.shape_cast %20 : vector<16xf32> to vector<16x1xf32>
    %cst_17 = arith.constant 3.200000e+01 : f32
    %22 = vector.broadcast %cst_17 : f32 to vector<16x1xf32>
    %23 = arith.divf %21, %22 : vector<16x1xf32>
    %cst_18 = arith.constant 9.99999974E-6 : f32
    %24 = vector.broadcast %cst_18 : f32 to vector<16x1xf32>
    %25 = arith.addf %23, %24 : vector<16x1xf32>
    %26 = math.rsqrt %25 : vector<16x1xf32>
    %27 = vector.broadcast %26 : vector<16x1xf32> to vector<16x32xf32>
    %28 = arith.mulf %18, %27 : vector<16x32xf32>
    %29 = vector.broadcast %10 : vector<1x32xf32> to vector<16x32xf32>
    %30 = arith.mulf %28, %29 : vector<16x32xf32>
    %31 = vector.broadcast %12 : vector<1x32xf32> to vector<16x32xf32>
    %32 = arith.addf %30, %31 : vector<16x32xf32>
    %c0_19 = arith.constant 0 : index
    %c0_20 = arith.constant 0 : index
    %c0_21 = arith.constant 0 : index
    %33 = vector.load %arg7[%c0_19, %c0_20, %c0_21] : memref<2x32x96xf32, #tpu.memory_space<vmem>>, vector<1x32x96xf32>
    %34 = vector.shape_cast %33 : vector<1x32x96xf32> to vector<32x96xf32>
    %cst_22 = arith.constant dense<0.000000e+00> : vector<16x96xf32>
    %35 = tpu.matmul %32, %34, %cst_22 {dimension_numbers = #tpu.dot_dimension_numbers<[1], [0], [0], [1], [0, 0, 1, 1], [], []>} : vector<16x32xf32>, vector<32x96xf32>, vector<16x96xf32> -> vector<16x96xf32>
    %c0_23 = arith.constant 0 : index
    %c0_24 = arith.constant 0 : index
    %c0_25 = arith.constant 0 : index
    %36 = vector.load %arg8[%c0_23, %c0_24, %c0_25] : memref<2x1x96xf32, #tpu.memory_space<vmem>>, vector<1x1x96xf32>
    %37 = vector.shape_cast %36 : vector<1x1x96xf32> to vector<1x96xf32>
    %38 = vector.broadcast %37 : vector<1x96xf32> to vector<16x96xf32>
    %39 = arith.addf %35, %38 : vector<16x96xf32>
    %40 = vector.extract_strided_slice %39 {offsets = [0, 0], sizes = [16, 8], strides = [1, 1]} : vector<16x96xf32> to vector<16x8xf32>
    %41 = vector.extract_strided_slice %39 {offsets = [0, 32], sizes = [16, 8], strides = [1, 1]} : vector<16x96xf32> to vector<16x8xf32>
    %42 = vector.extract_strided_slice %39 {offsets = [0, 64], sizes = [16, 8], strides = [1, 1]} : vector<16x96xf32> to vector<16x8xf32>
    %cst_26 = arith.constant dense<0.000000e+00> : vector<16x16xf32>
    %43 = tpu.matmul %40, %41, %cst_26 {dimension_numbers = #tpu.dot_dimension_numbers<[1], [1], [0], [0], [0, 0, 1, 0], [], []>} : vector<16x8xf32>, vector<16x8xf32>, vector<16x16xf32> -> vector<16x16xf32>
    %cst_27 = arith.constant dense<0xFF800000> : vector<16xf32>
    %44 = vector.multi_reduction <maximumf>, %43, %cst_27 [1] : vector<16x16xf32> to vector<16xf32>
    %45 = vector.shape_cast %44 : vector<16xf32> to vector<16x1xf32>
    %46 = vector.broadcast %45 : vector<16x1xf32> to vector<16x16xf32>
    %47 = arith.subf %43, %46 : vector<16x16xf32>
    %48 = math.exp %47 : vector<16x16xf32>
    %cst_28 = arith.constant dense<0.000000e+00> : vector<16xf32>
    %49 = vector.multi_reduction <add>, %48, %cst_28 [1] : vector<16x16xf32> to vector<16xf32>
    %50 = vector.shape_cast %49 : vector<16xf32> to vector<16x1xf32>
    %51 = tpu.reciprocal %50 {approx = true} : vector<16x1xf32> -> vector<16x1xf32>
    %52 = vector.broadcast %51 : vector<16x1xf32> to vector<16x16xf32>
    %53 = arith.mulf %48, %52 : vector<16x16xf32>
    %cst_29 = arith.constant dense<0.000000e+00> : vector<16x8xf32>
    %54 = tpu.matmul %53, %42, %cst_29 {dimension_numbers = #tpu.dot_dimension_numbers<[1], [0], [0], [1], [0, 0, 1, 1], [], []>} : vector<16x16xf32>, vector<16x8xf32>, vector<16x8xf32> -> vector<16x8xf32>
    %55 = vector.extract_strided_slice %39 {offsets = [0, 8], sizes = [16, 8], strides = [1, 1]} : vector<16x96xf32> to vector<16x8xf32>
    %56 = vector.extract_strided_slice %39 {offsets = [0, 40], sizes = [16, 8], strides = [1, 1]} : vector<16x96xf32> to vector<16x8xf32>
    %57 = vector.extract_strided_slice %39 {offsets = [0, 72], sizes = [16, 8], strides = [1, 1]} : vector<16x96xf32> to vector<16x8xf32>
    %cst_30 = arith.constant dense<0.000000e+00> : vector<16x16xf32>
    %58 = tpu.matmul %55, %56, %cst_30 {dimension_numbers = #tpu.dot_dimension_numbers<[1], [1], [0], [0], [0, 0, 1, 0], [], []>} : vector<16x8xf32>, vector<16x8xf32>, vector<16x16xf32> -> vector<16x16xf32>
    %cst_31 = arith.constant dense<0xFF800000> : vector<16xf32>
    %59 = vector.multi_reduction <maximumf>, %58, %cst_31 [1] : vector<16x16xf32> to vector<16xf32>
    %60 = vector.shape_cast %59 : vector<16xf32> to vector<16x1xf32>
    %61 = vector.broadcast %60 : vector<16x1xf32> to vector<16x16xf32>
    %62 = arith.subf %58, %61 : vector<16x16xf32>
    %63 = math.exp %62 : vector<16x16xf32>
    %cst_32 = arith.constant dense<0.000000e+00> : vector<16xf32>
    %64 = vector.multi_reduction <add>, %63, %cst_32 [1] : vector<16x16xf32> to vector<16xf32>
    %65 = vector.shape_cast %64 : vector<16xf32> to vector<16x1xf32>
    %66 = tpu.reciprocal %65 {approx = true} : vector<16x1xf32> -> vector<16x1xf32>
    %67 = vector.broadcast %66 : vector<16x1xf32> to vector<16x16xf32>
    %68 = arith.mulf %63, %67 : vector<16x16xf32>
    %cst_33 = arith.constant dense<0.000000e+00> : vector<16x8xf32>
    %69 = tpu.matmul %68, %57, %cst_33 {dimension_numbers = #tpu.dot_dimension_numbers<[1], [0], [0], [1], [0, 0, 1, 1], [], []>} : vector<16x16xf32>, vector<16x8xf32>, vector<16x8xf32> -> vector<16x8xf32>
    %70 = vector.extract_strided_slice %39 {offsets = [0, 16], sizes = [16, 8], strides = [1, 1]} : vector<16x96xf32> to vector<16x8xf32>
    %71 = vector.extract_strided_slice %39 {offsets = [0, 48], sizes = [16, 8], strides = [1, 1]} : vector<16x96xf32> to vector<16x8xf32>
    %72 = vector.extract_strided_slice %39 {offsets = [0, 80], sizes = [16, 8], strides = [1, 1]} : vector<16x96xf32> to vector<16x8xf32>
    %cst_34 = arith.constant dense<0.000000e+00> : vector<16x16xf32>
    %73 = tpu.matmul %70, %71, %cst_34 {dimension_numbers = #tpu.dot_dimension_numbers<[1], [1], [0], [0], [0, 0, 1, 0], [], []>} : vector<16x8xf32>, vector<16x8xf32>, vector<16x16xf32> -> vector<16x16xf32>
    %cst_35 = arith.constant dense<0xFF800000> : vector<16xf32>
    %74 = vector.multi_reduction <maximumf>, %73, %cst_35 [1] : vector<16x16xf32> to vector<16xf32>
    %75 = vector.shape_cast %74 : vector<16xf32> to vector<16x1xf32>
    %76 = vector.broadcast %75 : vector<16x1xf32> to vector<16x16xf32>
    %77 = arith.subf %73, %76 : vector<16x16xf32>
    %78 = math.exp %77 : vector<16x16xf32>
    %cst_36 = arith.constant dense<0.000000e+00> : vector<16xf32>
    %79 = vector.multi_reduction <add>, %78, %cst_36 [1] : vector<16x16xf32> to vector<16xf32>
    %80 = vector.shape_cast %79 : vector<16xf32> to vector<16x1xf32>
    %81 = tpu.reciprocal %80 {approx = true} : vector<16x1xf32> -> vector<16x1xf32>
    %82 = vector.broadcast %81 : vector<16x1xf32> to vector<16x16xf32>
    %83 = arith.mulf %78, %82 : vector<16x16xf32>
    %cst_37 = arith.constant dense<0.000000e+00> : vector<16x8xf32>
    %84 = tpu.matmul %83, %72, %cst_37 {dimension_numbers = #tpu.dot_dimension_numbers<[1], [0], [0], [1], [0, 0, 1, 1], [], []>} : vector<16x16xf32>, vector<16x8xf32>, vector<16x8xf32> -> vector<16x8xf32>
    %85 = vector.extract_strided_slice %39 {offsets = [0, 24], sizes = [16, 8], strides = [1, 1]} : vector<16x96xf32> to vector<16x8xf32>
    %86 = vector.extract_strided_slice %39 {offsets = [0, 56], sizes = [16, 8], strides = [1, 1]} : vector<16x96xf32> to vector<16x8xf32>
    %87 = vector.extract_strided_slice %39 {offsets = [0, 88], sizes = [16, 8], strides = [1, 1]} : vector<16x96xf32> to vector<16x8xf32>
    %cst_38 = arith.constant dense<0.000000e+00> : vector<16x16xf32>
    %88 = tpu.matmul %85, %86, %cst_38 {dimension_numbers = #tpu.dot_dimension_numbers<[1], [1], [0], [0], [0, 0, 1, 0], [], []>} : vector<16x8xf32>, vector<16x8xf32>, vector<16x16xf32> -> vector<16x16xf32>
    %cst_39 = arith.constant dense<0xFF800000> : vector<16xf32>
    %89 = vector.multi_reduction <maximumf>, %88, %cst_39 [1] : vector<16x16xf32> to vector<16xf32>
    %90 = vector.shape_cast %89 : vector<16xf32> to vector<16x1xf32>
    %91 = vector.broadcast %90 : vector<16x1xf32> to vector<16x16xf32>
    %92 = arith.subf %88, %91 : vector<16x16xf32>
    %93 = math.exp %92 : vector<16x16xf32>
    %cst_40 = arith.constant dense<0.000000e+00> : vector<16xf32>
    %94 = vector.multi_reduction <add>, %93, %cst_40 [1] : vector<16x16xf32> to vector<16xf32>
    %95 = vector.shape_cast %94 : vector<16xf32> to vector<16x1xf32>
    %96 = tpu.reciprocal %95 {approx = true} : vector<16x1xf32> -> vector<16x1xf32>
    %97 = vector.broadcast %96 : vector<16x1xf32> to vector<16x16xf32>
    %98 = arith.mulf %93, %97 : vector<16x16xf32>
    %cst_41 = arith.constant dense<0.000000e+00> : vector<16x8xf32>
    %99 = tpu.matmul %98, %87, %cst_41 {dimension_numbers = #tpu.dot_dimension_numbers<[1], [0], [0], [1], [0, 0, 1, 1], [], []>} : vector<16x16xf32>, vector<16x8xf32>, vector<16x8xf32> -> vector<16x8xf32>
    %100 = tpu.concatenate %54, %69, %84, %99 in 1 : vector<16x8xf32>, vector<16x8xf32>, vector<16x8xf32>, vector<16x8xf32> -> vector<16x32xf32>
    %c0_42 = arith.constant 0 : index
    %c0_43 = arith.constant 0 : index
    %c0_44 = arith.constant 0 : index
    %101 = vector.load %arg9[%c0_42, %c0_43, %c0_44] : memref<2x32x32xf32, #tpu.memory_space<vmem>>, vector<1x32x32xf32>
    %102 = vector.shape_cast %101 : vector<1x32x32xf32> to vector<32x32xf32>
    %cst_45 = arith.constant dense<0.000000e+00> : vector<16x32xf32>
    %103 = tpu.matmul %100, %102, %cst_45 {dimension_numbers = #tpu.dot_dimension_numbers<[1], [0], [0], [1], [0, 0, 1, 1], [], []>} : vector<16x32xf32>, vector<32x32xf32>, vector<16x32xf32> -> vector<16x32xf32>
    %c0_46 = arith.constant 0 : index
    %c0_47 = arith.constant 0 : index
    %c0_48 = arith.constant 0 : index
    %104 = vector.load %arg10[%c0_46, %c0_47, %c0_48] : memref<2x1x32xf32, #tpu.memory_space<vmem>>, vector<1x1x32xf32>
    %105 = vector.shape_cast %104 : vector<1x1x32xf32> to vector<1x32xf32>
    %106 = vector.broadcast %105 : vector<1x32xf32> to vector<16x32xf32>
    %107 = arith.addf %103, %106 : vector<16x32xf32>
    %108 = arith.addf %8, %107 : vector<16x32xf32>
    %c0_49 = arith.constant 0 : index
    %c0_50 = arith.constant 0 : index
    %c0_51 = arith.constant 0 : index
    %109 = vector.load %arg11[%c0_49, %c0_50, %c0_51] : memref<2x1x32xf32, #tpu.memory_space<vmem>>, vector<1x1x32xf32>
    %110 = vector.shape_cast %109 : vector<1x1x32xf32> to vector<1x32xf32>
    %c0_52 = arith.constant 0 : index
    %c0_53 = arith.constant 0 : index
    %c0_54 = arith.constant 0 : index
    %111 = vector.load %arg12[%c0_52, %c0_53, %c0_54] : memref<2x1x32xf32, #tpu.memory_space<vmem>>, vector<1x1x32xf32>
    %112 = vector.shape_cast %111 : vector<1x1x32xf32> to vector<1x32xf32>
    %cst_55 = arith.constant dense<0.000000e+00> : vector<16xf32>
    %113 = vector.multi_reduction <add>, %108, %cst_55 [1] : vector<16x32xf32> to vector<16xf32>
    %114 = vector.shape_cast %113 : vector<16xf32> to vector<16x1xf32>
    %cst_56 = arith.constant 3.200000e+01 : f32
    %115 = vector.broadcast %cst_56 : f32 to vector<16x1xf32>
    %116 = arith.divf %114, %115 : vector<16x1xf32>
    %117 = vector.broadcast %116 : vector<16x1xf32> to vector<16x32xf32>
    %118 = arith.subf %108, %117 : vector<16x32xf32>
    %119 = arith.mulf %118, %118 : vector<16x32xf32>
    %cst_57 = arith.constant dense<0.000000e+00> : vector<16xf32>
    %120 = vector.multi_reduction <add>, %119, %cst_57 [1] : vector<16x32xf32> to vector<16xf32>
    %121 = vector.shape_cast %120 : vector<16xf32> to vector<16x1xf32>
    %cst_58 = arith.constant 3.200000e+01 : f32
    %122 = vector.broadcast %cst_58 : f32 to vector<16x1xf32>
    %123 = arith.divf %121, %122 : vector<16x1xf32>
    %cst_59 = arith.constant 9.99999974E-6 : f32
    %124 = vector.broadcast %cst_59 : f32 to vector<16x1xf32>
    %125 = arith.addf %123, %124 : vector<16x1xf32>
    %126 = math.rsqrt %125 : vector<16x1xf32>
    %127 = vector.broadcast %126 : vector<16x1xf32> to vector<16x32xf32>
    %128 = arith.mulf %118, %127 : vector<16x32xf32>
    %129 = vector.broadcast %110 : vector<1x32xf32> to vector<16x32xf32>
    %130 = arith.mulf %128, %129 : vector<16x32xf32>
    %131 = vector.broadcast %112 : vector<1x32xf32> to vector<16x32xf32>
    %132 = arith.addf %130, %131 : vector<16x32xf32>
    %c0_60 = arith.constant 0 : index
    %c0_61 = arith.constant 0 : index
    %c0_62 = arith.constant 0 : index
    %133 = vector.load %arg13[%c0_60, %c0_61, %c0_62] : memref<2x32x64xf32, #tpu.memory_space<vmem>>, vector<1x32x64xf32>
    %134 = vector.shape_cast %133 : vector<1x32x64xf32> to vector<32x64xf32>
    %cst_63 = arith.constant dense<0.000000e+00> : vector<16x64xf32>
    %135 = tpu.matmul %132, %134, %cst_63 {dimension_numbers = #tpu.dot_dimension_numbers<[1], [0], [0], [1], [0, 0, 1, 1], [], []>} : vector<16x32xf32>, vector<32x64xf32>, vector<16x64xf32> -> vector<16x64xf32>
    %c0_64 = arith.constant 0 : index
    %c0_65 = arith.constant 0 : index
    %c0_66 = arith.constant 0 : index
    %136 = vector.load %arg14[%c0_64, %c0_65, %c0_66] : memref<2x1x64xf32, #tpu.memory_space<vmem>>, vector<1x1x64xf32>
    %137 = vector.shape_cast %136 : vector<1x1x64xf32> to vector<1x64xf32>
    %138 = vector.broadcast %137 : vector<1x64xf32> to vector<16x64xf32>
    %139 = arith.addf %135, %138 : vector<16x64xf32>
    %cst_67 = arith.constant 5.000000e-01 : f32
    %140 = vector.broadcast %cst_67 : f32 to vector<16x64xf32>
    %141 = arith.mulf %140, %139 : vector<16x64xf32>
    %cst_68 = arith.constant 4.471500e-02 : f32
    %142 = vector.broadcast %cst_68 : f32 to vector<16x64xf32>
    %143 = arith.mulf %142, %139 : vector<16x64xf32>
    %144 = arith.mulf %143, %139 : vector<16x64xf32>
    %145 = arith.mulf %144, %139 : vector<16x64xf32>
    %146 = arith.addf %139, %145 : vector<16x64xf32>
    %cst_69 = arith.constant 0.797884583 : f32
    %147 = vector.broadcast %cst_69 : f32 to vector<16x64xf32>
    %148 = arith.mulf %147, %146 : vector<16x64xf32>
    %149 = math.tanh %148 : vector<16x64xf32>
    %cst_70 = arith.constant 1.000000e+00 : f32
    %150 = vector.broadcast %cst_70 : f32 to vector<16x64xf32>
    %151 = arith.addf %150, %149 : vector<16x64xf32>
    %152 = arith.mulf %141, %151 : vector<16x64xf32>
    %c0_71 = arith.constant 0 : index
    %c0_72 = arith.constant 0 : index
    %c0_73 = arith.constant 0 : index
    %153 = vector.load %arg15[%c0_71, %c0_72, %c0_73] : memref<2x64x32xf32, #tpu.memory_space<vmem>>, vector<1x64x32xf32>
    %154 = vector.shape_cast %153 : vector<1x64x32xf32> to vector<64x32xf32>
    %cst_74 = arith.constant dense<0.000000e+00> : vector<16x32xf32>
    %155 = tpu.matmul %152, %154, %cst_74 {dimension_numbers = #tpu.dot_dimension_numbers<[1], [0], [0], [1], [0, 0, 1, 1], [], []>} : vector<16x64xf32>, vector<64x32xf32>, vector<16x32xf32> -> vector<16x32xf32>
    %c0_75 = arith.constant 0 : index
    %c0_76 = arith.constant 0 : index
    %c0_77 = arith.constant 0 : index
    %156 = vector.load %arg16[%c0_75, %c0_76, %c0_77] : memref<2x1x32xf32, #tpu.memory_space<vmem>>, vector<1x1x32xf32>
    %157 = vector.shape_cast %156 : vector<1x1x32xf32> to vector<1x32xf32>
    %158 = vector.broadcast %157 : vector<1x32xf32> to vector<16x32xf32>
    %159 = arith.addf %155, %158 : vector<16x32xf32>
    %160 = arith.addf %108, %159 : vector<16x32xf32>
    %c1 = arith.constant 1 : index
    %c0_78 = arith.constant 0 : index
    %c0_79 = arith.constant 0 : index
    %161 = vector.load %arg5[%c1, %c0_78, %c0_79] : memref<2x1x32xf32, #tpu.memory_space<vmem>>, vector<1x1x32xf32>
    %162 = vector.shape_cast %161 : vector<1x1x32xf32> to vector<1x32xf32>
    %c1_80 = arith.constant 1 : index
    %c0_81 = arith.constant 0 : index
    %c0_82 = arith.constant 0 : index
    %163 = vector.load %arg6[%c1_80, %c0_81, %c0_82] : memref<2x1x32xf32, #tpu.memory_space<vmem>>, vector<1x1x32xf32>
    %164 = vector.shape_cast %163 : vector<1x1x32xf32> to vector<1x32xf32>
    %cst_83 = arith.constant dense<0.000000e+00> : vector<16xf32>
    %165 = vector.multi_reduction <add>, %160, %cst_83 [1] : vector<16x32xf32> to vector<16xf32>
    %166 = vector.shape_cast %165 : vector<16xf32> to vector<16x1xf32>
    %cst_84 = arith.constant 3.200000e+01 : f32
    %167 = vector.broadcast %cst_84 : f32 to vector<16x1xf32>
    %168 = arith.divf %166, %167 : vector<16x1xf32>
    %169 = vector.broadcast %168 : vector<16x1xf32> to vector<16x32xf32>
    %170 = arith.subf %160, %169 : vector<16x32xf32>
    %171 = arith.mulf %170, %170 : vector<16x32xf32>
    %cst_85 = arith.constant dense<0.000000e+00> : vector<16xf32>
    %172 = vector.multi_reduction <add>, %171, %cst_85 [1] : vector<16x32xf32> to vector<16xf32>
    %173 = vector.shape_cast %172 : vector<16xf32> to vector<16x1xf32>
    %cst_86 = arith.constant 3.200000e+01 : f32
    %174 = vector.broadcast %cst_86 : f32 to vector<16x1xf32>
    %175 = arith.divf %173, %174 : vector<16x1xf32>
    %cst_87 = arith.constant 9.99999974E-6 : f32
    %176 = vector.broadcast %cst_87 : f32 to vector<16x1xf32>
    %177 = arith.addf %175, %176 : vector<16x1xf32>
    %178 = math.rsqrt %177 : vector<16x1xf32>
    %179 = vector.broadcast %178 : vector<16x1xf32> to vector<16x32xf32>
    %180 = arith.mulf %170, %179 : vector<16x32xf32>
    %181 = vector.broadcast %162 : vector<1x32xf32> to vector<16x32xf32>
    %182 = arith.mulf %180, %181 : vector<16x32xf32>
    %183 = vector.broadcast %164 : vector<1x32xf32> to vector<16x32xf32>
    %184 = arith.addf %182, %183 : vector<16x32xf32>
    %c1_88 = arith.constant 1 : index
    %c0_89 = arith.constant 0 : index
    %c0_90 = arith.constant 0 : index
    %185 = vector.load %arg7[%c1_88, %c0_89, %c0_90] : memref<2x32x96xf32, #tpu.memory_space<vmem>>, vector<1x32x96xf32>
    %186 = vector.shape_cast %185 : vector<1x32x96xf32> to vector<32x96xf32>
    %cst_91 = arith.constant dense<0.000000e+00> : vector<16x96xf32>
    %187 = tpu.matmul %184, %186, %cst_91 {dimension_numbers = #tpu.dot_dimension_numbers<[1], [0], [0], [1], [0, 0, 1, 1], [], []>} : vector<16x32xf32>, vector<32x96xf32>, vector<16x96xf32> -> vector<16x96xf32>
    %c1_92 = arith.constant 1 : index
    %c0_93 = arith.constant 0 : index
    %c0_94 = arith.constant 0 : index
    %188 = vector.load %arg8[%c1_92, %c0_93, %c0_94] : memref<2x1x96xf32, #tpu.memory_space<vmem>>, vector<1x1x96xf32>
    %189 = vector.shape_cast %188 : vector<1x1x96xf32> to vector<1x96xf32>
    %190 = vector.broadcast %189 : vector<1x96xf32> to vector<16x96xf32>
    %191 = arith.addf %187, %190 : vector<16x96xf32>
    %192 = vector.extract_strided_slice %191 {offsets = [0, 0], sizes = [16, 8], strides = [1, 1]} : vector<16x96xf32> to vector<16x8xf32>
    %193 = vector.extract_strided_slice %191 {offsets = [0, 32], sizes = [16, 8], strides = [1, 1]} : vector<16x96xf32> to vector<16x8xf32>
    %194 = vector.extract_strided_slice %191 {offsets = [0, 64], sizes = [16, 8], strides = [1, 1]} : vector<16x96xf32> to vector<16x8xf32>
    %cst_95 = arith.constant dense<0.000000e+00> : vector<16x16xf32>
    %195 = tpu.matmul %192, %193, %cst_95 {dimension_numbers = #tpu.dot_dimension_numbers<[1], [1], [0], [0], [0, 0, 1, 0], [], []>} : vector<16x8xf32>, vector<16x8xf32>, vector<16x16xf32> -> vector<16x16xf32>
    %cst_96 = arith.constant dense<0xFF800000> : vector<16xf32>
    %196 = vector.multi_reduction <maximumf>, %195, %cst_96 [1] : vector<16x16xf32> to vector<16xf32>
    %197 = vector.shape_cast %196 : vector<16xf32> to vector<16x1xf32>
    %198 = vector.broadcast %197 : vector<16x1xf32> to vector<16x16xf32>
    %199 = arith.subf %195, %198 : vector<16x16xf32>
    %200 = math.exp %199 : vector<16x16xf32>
    %cst_97 = arith.constant dense<0.000000e+00> : vector<16xf32>
    %201 = vector.multi_reduction <add>, %200, %cst_97 [1] : vector<16x16xf32> to vector<16xf32>
    %202 = vector.shape_cast %201 : vector<16xf32> to vector<16x1xf32>
    %203 = tpu.reciprocal %202 {approx = true} : vector<16x1xf32> -> vector<16x1xf32>
    %204 = vector.broadcast %203 : vector<16x1xf32> to vector<16x16xf32>
    %205 = arith.mulf %200, %204 : vector<16x16xf32>
    %cst_98 = arith.constant dense<0.000000e+00> : vector<16x8xf32>
    %206 = tpu.matmul %205, %194, %cst_98 {dimension_numbers = #tpu.dot_dimension_numbers<[1], [0], [0], [1], [0, 0, 1, 1], [], []>} : vector<16x16xf32>, vector<16x8xf32>, vector<16x8xf32> -> vector<16x8xf32>
    %207 = vector.extract_strided_slice %191 {offsets = [0, 8], sizes = [16, 8], strides = [1, 1]} : vector<16x96xf32> to vector<16x8xf32>
    %208 = vector.extract_strided_slice %191 {offsets = [0, 40], sizes = [16, 8], strides = [1, 1]} : vector<16x96xf32> to vector<16x8xf32>
    %209 = vector.extract_strided_slice %191 {offsets = [0, 72], sizes = [16, 8], strides = [1, 1]} : vector<16x96xf32> to vector<16x8xf32>
    %cst_99 = arith.constant dense<0.000000e+00> : vector<16x16xf32>
    %210 = tpu.matmul %207, %208, %cst_99 {dimension_numbers = #tpu.dot_dimension_numbers<[1], [1], [0], [0], [0, 0, 1, 0], [], []>} : vector<16x8xf32>, vector<16x8xf32>, vector<16x16xf32> -> vector<16x16xf32>
    %cst_100 = arith.constant dense<0xFF800000> : vector<16xf32>
    %211 = vector.multi_reduction <maximumf>, %210, %cst_100 [1] : vector<16x16xf32> to vector<16xf32>
    %212 = vector.shape_cast %211 : vector<16xf32> to vector<16x1xf32>
    %213 = vector.broadcast %212 : vector<16x1xf32> to vector<16x16xf32>
    %214 = arith.subf %210, %213 : vector<16x16xf32>
    %215 = math.exp %214 : vector<16x16xf32>
    %cst_101 = arith.constant dense<0.000000e+00> : vector<16xf32>
    %216 = vector.multi_reduction <add>, %215, %cst_101 [1] : vector<16x16xf32> to vector<16xf32>
    %217 = vector.shape_cast %216 : vector<16xf32> to vector<16x1xf32>
    %218 = tpu.reciprocal %217 {approx = true} : vector<16x1xf32> -> vector<16x1xf32>
    %219 = vector.broadcast %218 : vector<16x1xf32> to vector<16x16xf32>
    %220 = arith.mulf %215, %219 : vector<16x16xf32>
    %cst_102 = arith.constant dense<0.000000e+00> : vector<16x8xf32>
    %221 = tpu.matmul %220, %209, %cst_102 {dimension_numbers = #tpu.dot_dimension_numbers<[1], [0], [0], [1], [0, 0, 1, 1], [], []>} : vector<16x16xf32>, vector<16x8xf32>, vector<16x8xf32> -> vector<16x8xf32>
    %222 = vector.extract_strided_slice %191 {offsets = [0, 16], sizes = [16, 8], strides = [1, 1]} : vector<16x96xf32> to vector<16x8xf32>
    %223 = vector.extract_strided_slice %191 {offsets = [0, 48], sizes = [16, 8], strides = [1, 1]} : vector<16x96xf32> to vector<16x8xf32>
    %224 = vector.extract_strided_slice %191 {offsets = [0, 80], sizes = [16, 8], strides = [1, 1]} : vector<16x96xf32> to vector<16x8xf32>
    %cst_103 = arith.constant dense<0.000000e+00> : vector<16x16xf32>
    %225 = tpu.matmul %222, %223, %cst_103 {dimension_numbers = #tpu.dot_dimension_numbers<[1], [1], [0], [0], [0, 0, 1, 0], [], []>} : vector<16x8xf32>, vector<16x8xf32>, vector<16x16xf32> -> vector<16x16xf32>
    %cst_104 = arith.constant dense<0xFF800000> : vector<16xf32>
    %226 = vector.multi_reduction <maximumf>, %225, %cst_104 [1] : vector<16x16xf32> to vector<16xf32>
    %227 = vector.shape_cast %226 : vector<16xf32> to vector<16x1xf32>
    %228 = vector.broadcast %227 : vector<16x1xf32> to vector<16x16xf32>
    %229 = arith.subf %225, %228 : vector<16x16xf32>
    %230 = math.exp %229 : vector<16x16xf32>
    %cst_105 = arith.constant dense<0.000000e+00> : vector<16xf32>
    %231 = vector.multi_reduction <add>, %230, %cst_105 [1] : vector<16x16xf32> to vector<16xf32>
    %232 = vector.shape_cast %231 : vector<16xf32> to vector<16x1xf32>
    %233 = tpu.reciprocal %232 {approx = true} : vector<16x1xf32> -> vector<16x1xf32>
    %234 = vector.broadcast %233 : vector<16x1xf32> to vector<16x16xf32>
    %235 = arith.mulf %230, %234 : vector<16x16xf32>
    %cst_106 = arith.constant dense<0.000000e+00> : vector<16x8xf32>
    %236 = tpu.matmul %235, %224, %cst_106 {dimension_numbers = #tpu.dot_dimension_numbers<[1], [0], [0], [1], [0, 0, 1, 1], [], []>} : vector<16x16xf32>, vector<16x8xf32>, vector<16x8xf32> -> vector<16x8xf32>
    %237 = vector.extract_strided_slice %191 {offsets = [0, 24], sizes = [16, 8], strides = [1, 1]} : vector<16x96xf32> to vector<16x8xf32>
    %238 = vector.extract_strided_slice %191 {offsets = [0, 56], sizes = [16, 8], strides = [1, 1]} : vector<16x96xf32> to vector<16x8xf32>
    %239 = vector.extract_strided_slice %191 {offsets = [0, 88], sizes = [16, 8], strides = [1, 1]} : vector<16x96xf32> to vector<16x8xf32>
    %cst_107 = arith.constant dense<0.000000e+00> : vector<16x16xf32>
    %240 = tpu.matmul %237, %238, %cst_107 {dimension_numbers = #tpu.dot_dimension_numbers<[1], [1], [0], [0], [0, 0, 1, 0], [], []>} : vector<16x8xf32>, vector<16x8xf32>, vector<16x16xf32> -> vector<16x16xf32>
    %cst_108 = arith.constant dense<0xFF800000> : vector<16xf32>
    %241 = vector.multi_reduction <maximumf>, %240, %cst_108 [1] : vector<16x16xf32> to vector<16xf32>
    %242 = vector.shape_cast %241 : vector<16xf32> to vector<16x1xf32>
    %243 = vector.broadcast %242 : vector<16x1xf32> to vector<16x16xf32>
    %244 = arith.subf %240, %243 : vector<16x16xf32>
    %245 = math.exp %244 : vector<16x16xf32>
    %cst_109 = arith.constant dense<0.000000e+00> : vector<16xf32>
    %246 = vector.multi_reduction <add>, %245, %cst_109 [1] : vector<16x16xf32> to vector<16xf32>
    %247 = vector.shape_cast %246 : vector<16xf32> to vector<16x1xf32>
    %248 = tpu.reciprocal %247 {approx = true} : vector<16x1xf32> -> vector<16x1xf32>
    %249 = vector.broadcast %248 : vector<16x1xf32> to vector<16x16xf32>
    %250 = arith.mulf %245, %249 : vector<16x16xf32>
    %cst_110 = arith.constant dense<0.000000e+00> : vector<16x8xf32>
    %251 = tpu.matmul %250, %239, %cst_110 {dimension_numbers = #tpu.dot_dimension_numbers<[1], [0], [0], [1], [0, 0, 1, 1], [], []>} : vector<16x16xf32>, vector<16x8xf32>, vector<16x8xf32> -> vector<16x8xf32>
    %252 = tpu.concatenate %206, %221, %236, %251 in 1 : vector<16x8xf32>, vector<16x8xf32>, vector<16x8xf32>, vector<16x8xf32> -> vector<16x32xf32>
    %c1_111 = arith.constant 1 : index
    %c0_112 = arith.constant 0 : index
    %c0_113 = arith.constant 0 : index
    %253 = vector.load %arg9[%c1_111, %c0_112, %c0_113] : memref<2x32x32xf32, #tpu.memory_space<vmem>>, vector<1x32x32xf32>
    %254 = vector.shape_cast %253 : vector<1x32x32xf32> to vector<32x32xf32>
    %cst_114 = arith.constant dense<0.000000e+00> : vector<16x32xf32>
    %255 = tpu.matmul %252, %254, %cst_114 {dimension_numbers = #tpu.dot_dimension_numbers<[1], [0], [0], [1], [0, 0, 1, 1], [], []>} : vector<16x32xf32>, vector<32x32xf32>, vector<16x32xf32> -> vector<16x32xf32>
    %c1_115 = arith.constant 1 : index
    %c0_116 = arith.constant 0 : index
    %c0_117 = arith.constant 0 : index
    %256 = vector.load %arg10[%c1_115, %c0_116, %c0_117] : memref<2x1x32xf32, #tpu.memory_space<vmem>>, vector<1x1x32xf32>
    %257 = vector.shape_cast %256 : vector<1x1x32xf32> to vector<1x32xf32>
    %258 = vector.broadcast %257 : vector<1x32xf32> to vector<16x32xf32>
    %259 = arith.addf %255, %258 : vector<16x32xf32>
    %260 = arith.addf %160, %259 : vector<16x32xf32>
    %c1_118 = arith.constant 1 : index
    %c0_119 = arith.constant 0 : index
    %c0_120 = arith.constant 0 : index
    %261 = vector.load %arg11[%c1_118, %c0_119, %c0_120] : memref<2x1x32xf32, #tpu.memory_space<vmem>>, vector<1x1x32xf32>
    %262 = vector.shape_cast %261 : vector<1x1x32xf32> to vector<1x32xf32>
    %c1_121 = arith.constant 1 : index
    %c0_122 = arith.constant 0 : index
    %c0_123 = arith.constant 0 : index
    %263 = vector.load %arg12[%c1_121, %c0_122, %c0_123] : memref<2x1x32xf32, #tpu.memory_space<vmem>>, vector<1x1x32xf32>
    %264 = vector.shape_cast %263 : vector<1x1x32xf32> to vector<1x32xf32>
    %cst_124 = arith.constant dense<0.000000e+00> : vector<16xf32>
    %265 = vector.multi_reduction <add>, %260, %cst_124 [1] : vector<16x32xf32> to vector<16xf32>
    %266 = vector.shape_cast %265 : vector<16xf32> to vector<16x1xf32>
    %cst_125 = arith.constant 3.200000e+01 : f32
    %267 = vector.broadcast %cst_125 : f32 to vector<16x1xf32>
    %268 = arith.divf %266, %267 : vector<16x1xf32>
    %269 = vector.broadcast %268 : vector<16x1xf32> to vector<16x32xf32>
    %270 = arith.subf %260, %269 : vector<16x32xf32>
    %271 = arith.mulf %270, %270 : vector<16x32xf32>
    %cst_126 = arith.constant dense<0.000000e+00> : vector<16xf32>
    %272 = vector.multi_reduction <add>, %271, %cst_126 [1] : vector<16x32xf32> to vector<16xf32>
    %273 = vector.shape_cast %272 : vector<16xf32> to vector<16x1xf32>
    %cst_127 = arith.constant 3.200000e+01 : f32
    %274 = vector.broadcast %cst_127 : f32 to vector<16x1xf32>
    %275 = arith.divf %273, %274 : vector<16x1xf32>
    %cst_128 = arith.constant 9.99999974E-6 : f32
    %276 = vector.broadcast %cst_128 : f32 to vector<16x1xf32>
    %277 = arith.addf %275, %276 : vector<16x1xf32>
    %278 = math.rsqrt %277 : vector<16x1xf32>
    %279 = vector.broadcast %278 : vector<16x1xf32> to vector<16x32xf32>
    %280 = arith.mulf %270, %279 : vector<16x32xf32>
    %281 = vector.broadcast %262 : vector<1x32xf32> to vector<16x32xf32>
    %282 = arith.mulf %280, %281 : vector<16x32xf32>
    %283 = vector.broadcast %264 : vector<1x32xf32> to vector<16x32xf32>
    %284 = arith.addf %282, %283 : vector<16x32xf32>
    %c1_129 = arith.constant 1 : index
    %c0_130 = arith.constant 0 : index
    %c0_131 = arith.constant 0 : index
    %285 = vector.load %arg13[%c1_129, %c0_130, %c0_131] : memref<2x32x64xf32, #tpu.memory_space<vmem>>, vector<1x32x64xf32>
    %286 = vector.shape_cast %285 : vector<1x32x64xf32> to vector<32x64xf32>
    %cst_132 = arith.constant dense<0.000000e+00> : vector<16x64xf32>
    %287 = tpu.matmul %284, %286, %cst_132 {dimension_numbers = #tpu.dot_dimension_numbers<[1], [0], [0], [1], [0, 0, 1, 1], [], []>} : vector<16x32xf32>, vector<32x64xf32>, vector<16x64xf32> -> vector<16x64xf32>
    %c1_133 = arith.constant 1 : index
    %c0_134 = arith.constant 0 : index
    %c0_135 = arith.constant 0 : index
    %288 = vector.load %arg14[%c1_133, %c0_134, %c0_135] : memref<2x1x64xf32, #tpu.memory_space<vmem>>, vector<1x1x64xf32>
    %289 = vector.shape_cast %288 : vector<1x1x64xf32> to vector<1x64xf32>
    %290 = vector.broadcast %289 : vector<1x64xf32> to vector<16x64xf32>
    %291 = arith.addf %287, %290 : vector<16x64xf32>
    %cst_136 = arith.constant 5.000000e-01 : f32
    %292 = vector.broadcast %cst_136 : f32 to vector<16x64xf32>
    %293 = arith.mulf %292, %291 : vector<16x64xf32>
    %cst_137 = arith.constant 4.471500e-02 : f32
    %294 = vector.broadcast %cst_137 : f32 to vector<16x64xf32>
    %295 = arith.mulf %294, %291 : vector<16x64xf32>
    %296 = arith.mulf %295, %291 : vector<16x64xf32>
    %297 = arith.mulf %296, %291 : vector<16x64xf32>
    %298 = arith.addf %291, %297 : vector<16x64xf32>
    %cst_138 = arith.constant 0.797884583 : f32
    %299 = vector.broadcast %cst_138 : f32 to vector<16x64xf32>
    %300 = arith.mulf %299, %298 : vector<16x64xf32>
    %301 = math.tanh %300 : vector<16x64xf32>
    %cst_139 = arith.constant 1.000000e+00 : f32
    %302 = vector.broadcast %cst_139 : f32 to vector<16x64xf32>
    %303 = arith.addf %302, %301 : vector<16x64xf32>
    %304 = arith.mulf %293, %303 : vector<16x64xf32>
    %c1_140 = arith.constant 1 : index
    %c0_141 = arith.constant 0 : index
    %c0_142 = arith.constant 0 : index
    %305 = vector.load %arg15[%c1_140, %c0_141, %c0_142] : memref<2x64x32xf32, #tpu.memory_space<vmem>>, vector<1x64x32xf32>
    %306 = vector.shape_cast %305 : vector<1x64x32xf32> to vector<64x32xf32>
    %cst_143 = arith.constant dense<0.000000e+00> : vector<16x32xf32>
    %307 = tpu.matmul %304, %306, %cst_143 {dimension_numbers = #tpu.dot_dimension_numbers<[1], [0], [0], [1], [0, 0, 1, 1], [], []>} : vector<16x64xf32>, vector<64x32xf32>, vector<16x32xf32> -> vector<16x32xf32>
    %c1_144 = arith.constant 1 : index
    %c0_145 = arith.constant 0 : index
    %c0_146 = arith.constant 0 : index
    %308 = vector.load %arg16[%c1_144, %c0_145, %c0_146] : memref<2x1x32xf32, #tpu.memory_space<vmem>>, vector<1x1x32xf32>
    %309 = vector.shape_cast %308 : vector<1x1x32xf32> to vector<1x32xf32>
    %310 = vector.broadcast %309 : vector<1x32xf32> to vector<16x32xf32>
    %311 = arith.addf %307, %310 : vector<16x32xf32>
    %312 = arith.addf %260, %311 : vector<16x32xf32>
    %c0_147 = arith.constant 0 : index
    %c0_148 = arith.constant 0 : index
    %313 = vector.load %arg17[%c0_147, %c0_148] : memref<1x32xf32, #tpu.memory_space<vmem>>, vector<1x32xf32>
    %c0_149 = arith.constant 0 : index
    %c0_150 = arith.constant 0 : index
    %314 = vector.load %arg18[%c0_149, %c0_150] : memref<1x32xf32, #tpu.memory_space<vmem>>, vector<1x32xf32>
    %cst_151 = arith.constant dense<0.000000e+00> : vector<16xf32>
    %315 = vector.multi_reduction <add>, %312, %cst_151 [1] : vector<16x32xf32> to vector<16xf32>
    %316 = vector.shape_cast %315 : vector<16xf32> to vector<16x1xf32>
    %cst_152 = arith.constant 3.200000e+01 : f32
    %317 = vector.broadcast %cst_152 : f32 to vector<16x1xf32>
    %318 = arith.divf %316, %317 : vector<16x1xf32>
    %319 = vector.broadcast %318 : vector<16x1xf32> to vector<16x32xf32>
    %320 = arith.subf %312, %319 : vector<16x32xf32>
    %321 = arith.mulf %320, %320 : vector<16x32xf32>
    %cst_153 = arith.constant dense<0.000000e+00> : vector<16xf32>
    %322 = vector.multi_reduction <add>, %321, %cst_153 [1] : vector<16x32xf32> to vector<16xf32>
    %323 = vector.shape_cast %322 : vector<16xf32> to vector<16x1xf32>
    %cst_154 = arith.constant 3.200000e+01 : f32
    %324 = vector.broadcast %cst_154 : f32 to vector<16x1xf32>
    %325 = arith.divf %323, %324 : vector<16x1xf32>
    %cst_155 = arith.constant 9.99999974E-6 : f32
    %326 = vector.broadcast %cst_155 : f32 to vector<16x1xf32>
    %327 = arith.addf %325, %326 : vector<16x1xf32>
    %328 = math.rsqrt %327 : vector<16x1xf32>
    %329 = vector.broadcast %328 : vector<16x1xf32> to vector<16x32xf32>
    %330 = arith.mulf %320, %329 : vector<16x32xf32>
    %331 = vector.broadcast %313 : vector<1x32xf32> to vector<16x32xf32>
    %332 = arith.mulf %330, %331 : vector<16x32xf32>
    %333 = vector.broadcast %314 : vector<1x32xf32> to vector<16x32xf32>
    %334 = arith.addf %332, %333 : vector<16x32xf32>
    %cst_156 = arith.constant dense<0.000000e+00> : vector<32xf32>
    %335 = vector.multi_reduction <add>, %334, %cst_156 [0] : vector<16x32xf32> to vector<32xf32>
    %336 = vector.shape_cast %335 : vector<32xf32> to vector<1x32xf32>
    %cst_157 = arith.constant 1.600000e+01 : f32
    %337 = vector.broadcast %cst_157 : f32 to vector<1x32xf32>
    %338 = arith.divf %336, %337 : vector<1x32xf32>
    %c0_158 = arith.constant 0 : index
    %c0_159 = arith.constant 0 : index
    %339 = vector.load %arg19[%c0_158, %c0_159] : memref<32x512xf32, #tpu.memory_space<vmem>>, vector<32x512xf32>
    %cst_160 = arith.constant dense<0.000000e+00> : vector<1x512xf32>
    %340 = tpu.matmul %338, %339, %cst_160 {dimension_numbers = #tpu.dot_dimension_numbers<[1], [0], [0], [1], [0, 0, 1, 1], [], []>} : vector<1x32xf32>, vector<32x512xf32>, vector<1x512xf32> -> vector<1x512xf32>
    %c0_161 = arith.constant 0 : index
    %c0_162 = arith.constant 0 : index
    %c0_163 = arith.constant 0 : index
    %341 = vector.load %arg20[%c0_161, %c0_162, %c0_163] : memref<1x1x512xf32, #tpu.memory_space<vmem>>, vector<1x1x512xf32>
    %342 = vector.shape_cast %341 : vector<1x1x512xf32> to vector<1x512xf32>
    %343 = vector.shape_cast %340 : vector<1x512xf32> to vector<1x1x512xf32>
    tpu.vector_store %arg20[%c0_161, %c0_162, %c0_163], %343 {strides = array<i32>} : memref<1x1x512xf32, #tpu.memory_space<vmem>>, vector<1x1x512xf32>,
    return
  }
  func.func @transform_0(%arg0: i32) -> (i32, i32, i32) {
    %c0_i32 = arith.constant 0 : i32
    %c0_i32_0 = arith.constant 0 : i32
    %c0_i32_1 = arith.constant 0 : i32
    return %arg0, %c0_i32, %c0_i32_0 : i32, i32, i32
  }
  func.func @transform_1(%arg0: i32) -> (i32, i32) {
    %c0_i32 = arith.constant 0 : i32
    %c0_i32_0 = arith.constant 0 : i32
    %c0_i32_1 = arith.constant 0 : i32
    return %c0_i32, %c0_i32_0 : i32, i32
  }
  func.func @transform_2(%arg0: i32) -> (i32, i32) {
    %c0_i32 = arith.constant 0 : i32
    %c0_i32_0 = arith.constant 0 : i32
    %c0_i32_1 = arith.constant 0 : i32
    return %c0_i32, %c0_i32_0 : i32, i32
  }
  func.func @transform_3(%arg0: i32) -> (i32, i32) {
    %c0_i32 = arith.constant 0 : i32
    %c0_i32_0 = arith.constant 0 : i32
    %c0_i32_1 = arith.constant 0 : i32
    return %c0_i32, %c0_i32_0 : i32, i32
  }
  func.func @transform_4(%arg0: i32) -> (i32, i32, i32) {
    %c0_i32 = arith.constant 0 : i32
    %c0_i32_0 = arith.constant 0 : i32
    %c0_i32_1 = arith.constant 0 : i32
    %c0_i32_2 = arith.constant 0 : i32
    return %c0_i32, %c0_i32_0, %c0_i32_1 : i32, i32, i32
  }
  func.func @transform_5(%arg0: i32) -> (i32, i32, i32) {
    %c0_i32 = arith.constant 0 : i32
    %c0_i32_0 = arith.constant 0 : i32
    %c0_i32_1 = arith.constant 0 : i32
    %c0_i32_2 = arith.constant 0 : i32
    return %c0_i32, %c0_i32_0, %c0_i32_1 : i32, i32, i32
  }
  func.func @transform_6(%arg0: i32) -> (i32, i32, i32) {
    %c0_i32 = arith.constant 0 : i32
    %c0_i32_0 = arith.constant 0 : i32
    %c0_i32_1 = arith.constant 0 : i32
    %c0_i32_2 = arith.constant 0 : i32
    return %c0_i32, %c0_i32_0, %c0_i32_1 : i32, i32, i32
  }
  func.func @transform_7(%arg0: i32) -> (i32, i32, i32) {
    %c0_i32 = arith.constant 0 : i32
    %c0_i32_0 = arith.constant 0 : i32
    %c0_i32_1 = arith.constant 0 : i32
    %c0_i32_2 = arith.constant 0 : i32
    return %c0_i32, %c0_i32_0, %c0_i32_1 : i32, i32, i32
  }
  func.func @transform_8(%arg0: i32) -> (i32, i32, i32) {
    %c0_i32 = arith.constant 0 : i32
    %c0_i32_0 = arith.constant 0 : i32
    %c0_i32_1 = arith.constant 0 : i32
    %c0_i32_2 = arith.constant 0 : i32
    return %c0_i32, %c0_i32_0, %c0_i32_1 : i32, i32, i32
  }
  func.func @transform_9(%arg0: i32) -> (i32, i32, i32) {
    %c0_i32 = arith.constant 0 : i32
    %c0_i32_0 = arith.constant 0 : i32
    %c0_i32_1 = arith.constant 0 : i32
    %c0_i32_2 = arith.constant 0 : i32
    return %c0_i32, %c0_i32_0, %c0_i32_1 : i32, i32, i32
  }
  func.func @transform_10(%arg0: i32) -> (i32, i32, i32) {
    %c0_i32 = arith.constant 0 : i32
    %c0_i32_0 = arith.constant 0 : i32
    %c0_i32_1 = arith.constant 0 : i32
    %c0_i32_2 = arith.constant 0 : i32
    return %c0_i32, %c0_i32_0, %c0_i32_1 : i32, i32, i32
  }
  func.func @transform_11(%arg0: i32) -> (i32, i32, i32) {
    %c0_i32 = arith.constant 0 : i32
    %c0_i32_0 = arith.constant 0 : i32
    %c0_i32_1 = arith.constant 0 : i32
    %c0_i32_2 = arith.constant 0 : i32
    return %c0_i32, %c0_i32_0, %c0_i32_1 : i32, i32, i32
  }
  func.func @transform_12(%arg0: i32) -> (i32, i32, i32) {
    %c0_i32 = arith.constant 0 : i32
    %c0_i32_0 = arith.constant 0 : i32
    %c0_i32_1 = arith.constant 0 : i32
    %c0_i32_2 = arith.constant 0 : i32
    return %c0_i32, %c0_i32_0, %c0_i32_1 : i32, i32, i32
  }
  func.func @transform_13(%arg0: i32) -> (i32, i32, i32) {
    %c0_i32 = arith.constant 0 : i32
    %c0_i32_0 = arith.constant 0 : i32
    %c0_i32_1 = arith.constant 0 : i32
    %c0_i32_2 = arith.constant 0 : i32
    return %c0_i32, %c0_i32_0, %c0_i32_1 : i32, i32, i32
  }
  func.func @transform_14(%arg0: i32) -> (i32, i32, i32) {
    %c0_i32 = arith.constant 0 : i32
    %c0_i32_0 = arith.constant 0 : i32
    %c0_i32_1 = arith.constant 0 : i32
    %c0_i32_2 = arith.constant 0 : i32
    return %c0_i32, %c0_i32_0, %c0_i32_1 : i32, i32, i32
  }
  func.func @transform_15(%arg0: i32) -> (i32, i32, i32) {
    %c0_i32 = arith.constant 0 : i32
    %c0_i32_0 = arith.constant 0 : i32
    %c0_i32_1 = arith.constant 0 : i32
    %c0_i32_2 = arith.constant 0 : i32
    return %c0_i32, %c0_i32_0, %c0_i32_1 : i32, i32, i32
  }
  func.func @transform_16(%arg0: i32) -> (i32, i32) {
    %c0_i32 = arith.constant 0 : i32
    %c0_i32_0 = arith.constant 0 : i32
    %c0_i32_1 = arith.constant 0 : i32
    return %c0_i32, %c0_i32_0 : i32, i32
  }
  func.func @transform_17(%arg0: i32) -> (i32, i32) {
    %c0_i32 = arith.constant 0 : i32
    %c0_i32_0 = arith.constant 0 : i32
    %c0_i32_1 = arith.constant 0 : i32
    return %c0_i32, %c0_i32_0 : i32, i32
  }
  func.func @transform_18(%arg0: i32) -> (i32, i32) {
    %c0_i32 = arith.constant 0 : i32
    %c0_i32_0 = arith.constant 0 : i32
    %c0_i32_1 = arith.constant 0 : i32
    return %c0_i32, %c0_i32_0 : i32, i32
  }
  func.func @transform_19(%arg0: i32) -> (i32, i32, i32) {
    %c0_i32 = arith.constant 0 : i32
    %c0_i32_0 = arith.constant 0 : i32
    %c0_i32_1 = arith.constant 0 : i32
    return %arg0, %c0_i32, %c0_i32_0 : i32, i32, i32
  }
}

</mosaic_0001>

<llo_original>
// kernel: medclip_forward.1
$region0: #{medclip_forward.1}
  #allocation0 [shape = 'u32[]', space=smem, size = 0x4, offset = 0x4, fixed_abs, tag = 'smem constant byte address 0x4 - core index']
  #allocation1 [shape = 'u32[72,128]{1,0:T(1,128)}', space=vmem, size = 0x9000, scoped, tag = 'internal scratch']
  %s0 = inlined_call_operand.vmem [shape: f32[2,16,48], index: 0, kind: input, shape index: {}]
  %s1 = inlined_call_operand.vmem [shape: f32[48,32], index: 1, kind: input, shape index: {}]
  %s2 = inlined_call_operand.vmem [shape: f32[1,32], index: 2, kind: input, shape index: {}]
  %s3 = inlined_call_operand.vmem [shape: f32[16,32], index: 3, kind: input, shape index: {}]
  %s4 = inlined_call_operand.vmem [shape: f32[2,1,32], index: 4, kind: input, shape index: {}]
  %s5 = inlined_call_operand.vmem [shape: f32[2,1,32], index: 5, kind: input, shape index: {}]
  %s6 = inlined_call_operand.vmem [shape: f32[2,32,96], index: 6, kind: input, shape index: {}]
  %s7 = inlined_call_operand.vmem [shape: f32[2,1,96], index: 7, kind: input, shape index: {}]
  %s8 = inlined_call_operand.vmem [shape: f32[2,32,32], index: 8, kind: input, shape index: {}]
  %s9 = inlined_call_operand.vmem [shape: f32[2,1,32], index: 9, kind: input, shape index: {}]
  %s10 = inlined_call_operand.vmem [shape: f32[2,1,32], index: 10, kind: input, shape index: {}]
  %s11 = inlined_call_operand.vmem [shape: f32[2,1,32], index: 11, kind: input, shape index: {}]
  %s12 = inlined_call_operand.vmem [shape: f32[2,32,64], index: 12, kind: input, shape index: {}]
  %s13 = inlined_call_operand.vmem [shape: f32[2,1,64], index: 13, kind: input, shape index: {}]
  %s14 = inlined_call_operand.vmem [shape: f32[2,64,32], index: 14, kind: input, shape index: {}]
  %s15 = inlined_call_operand.vmem [shape: f32[2,1,32], index: 15, kind: input, shape index: {}]
  %s16 = inlined_call_operand.vmem [shape: f32[1,32], index: 16, kind: input, shape index: {}]
  %s17 = inlined_call_operand.vmem [shape: f32[1,32], index: 17, kind: input, shape index: {}]
  %s18 = inlined_call_operand.vmem [shape: f32[32,512], index: 18, kind: input, shape index: {}]
  %s19 = inlined_call_operand.vmem [shape: f32[2,1,512], index: 19, kind: output, shape index: {}]
  %s20 = sld [smem:[#allocation0]]
  $region109: #{medclip_forward.1} parent=0
    _
  %s22 = ssub.s32 1, %s20
  %s23 = scalar_select 0, %s22, %s20
  loop: start=0, step=1, limit=4
  $region2: #{medclip_forward.1} parent=0 // loop_pre_header
    _
  $region3: #{medclip_forward.1} parent=0 // loop_header
    %s25 = sphi 0, %s29
    %p26 = scmp.ge.s32.totalorder %s25, 4
    %s35 = sphi 0, %s37
    %s38 = sphi 0, %s35
    %s39 = sphi 0, %s38
    %s55 = sphi 0, %s39
    %s59 = sphi 0, %s59
    %s61 = sphi 0, %s59
    %s62 = sphi 0, %s61
    %s76 = sphi 0, %s62
    %s80 = sphi 0, %s80
    %s82 = sphi 0, %s80
    %s83 = sphi 0, %s82
    %s97 = sphi 0, %s83
    %s101 = sphi 0, %s101
    %s103 = sphi 0, %s101
    %s104 = sphi 0, %s103
    %s118 = sphi 0, %s104
    %s122 = sphi 0, %s122
    %s124 = sphi 0, %s122
    %s125 = sphi 0, %s124
    %s139 = sphi 0, %s125
    %s143 = sphi 0, %s143
    %s145 = sphi 0, %s143
    %s146 = sphi 0, %s145
    %s160 = sphi 0, %s146
    %s164 = sphi 0, %s164
    %s166 = sphi 0, %s164
    %s167 = sphi 0, %s166
    %s181 = sphi 0, %s167
    %s185 = sphi 0, %s185
    %s187 = sphi 0, %s185
    %s188 = sphi 0, %s187
    %s202 = sphi 0, %s188
    %s206 = sphi 0, %s206
    %s208 = sphi 0, %s206
    %s209 = sphi 0, %s208
    %s223 = sphi 0, %s209
    %s227 = sphi 0, %s227
    %s229 = sphi 0, %s227
    %s230 = sphi 0, %s229
    %s244 = sphi 0, %s230
    %s248 = sphi 0, %s248
    %s250 = sphi 0, %s248
    %s251 = sphi 0, %s250
    %s265 = sphi 0, %s251
    %s269 = sphi 0, %s269
    %s271 = sphi 0, %s269
    %s272 = sphi 0, %s271
    %s286 = sphi 0, %s272
    %s290 = sphi 0, %s290
    %s292 = sphi 0, %s290
    %s293 = sphi 0, %s292
    %s307 = sphi 0, %s293
    %s311 = sphi 0, %s311
    %s313 = sphi 0, %s311
    %s314 = sphi 0, %s313
    %s328 = sphi 0, %s314
    %s332 = sphi 0, %s332
    %s334 = sphi 0, %s332
    %s335 = sphi 0, %s334
    %s349 = sphi 0, %s335
    %s353 = sphi 0, %s353
    %s355 = sphi 0, %s353
    %s356 = sphi 0, %s355
    %s370 = sphi 0, %s356
    %s374 = sphi 0, %s374
    %s376 = sphi 0, %s374
    %s377 = sphi 0, %s376
    %s391 = sphi 0, %s377
    %s395 = sphi 0, %s395
    %s397 = sphi 0, %s395
    %s398 = sphi 0, %s397
    %s412 = sphi 0, %s398
    %s416 = sphi 0, %s416
    %s418 = sphi 0, %s416
    %s419 = sphi 0, %s418
    %s433 = sphi 0, %s419
    %s439 = sphi 0, %s441
    %s442 = sphi 0, %s439
    %s443 = sphi 0, %s442
    %s459 = sphi 0, %s443
  $region4: #{medclip_forward.1} parent=0 // loop_header_branch
    %28 = sbr.rel (%p26) target = $region8
  $region5: #{medclip_forward.1} parent=0 // loop_body
    %s30 = ssub.s32 %s25, 1
    %s31 = ssub.s32 %s25, 2
    %s32 = sadd.s32 %s25, 1
    %s33 = ssub.s32 %s25, %s32
    %p34 = scmp.eq.s32.totalorder %s33, 0
    %s36 = sadd.s32 %s35, 1
    %s37 = scalar_select %p34, %s35, %s36
    %p40 = pneg %p34
    %p41 = scmp.eq.s32.totalorder %s25, 1
    %p42 = por %p40, %p41
    %p43 = scmp.ne.s32.totalorder %s35, %s38
    %p44 = scmp.eq.s32.totalorder %s25, 0
    %p45 = por %p43, %p44
    %p46 = scmp.ne.s32.totalorder %s35, %s38
    %p47 = scmp.eq.s32.totalorder %s30, 1
    %p48 = por %p46, %p47
    %p49 = scmp.ne.s32.totalorder %s38, %s39
    %p50 = scmp.eq.s32.totalorder %s30, 0
    %p51 = por %p49, %p50
    %p52 = scmp.ne.s32.totalorder %s38, %s39
    %p53 = scmp.eq.s32.totalorder %s31, 1
    %p54 = por %p52, %p53
    %p56 = scmp.ne.s32.totalorder %s39, %s55
    %p57 = scmp.eq.s32.totalorder %s31, 0
    %p58 = por %p56, %p57
    %s60 = sadd.s32 %s59, 1
    %p63 = scmp.eq.s32.totalorder %s25, 1
    %p64 = scmp.ne.s32.totalorder %s59, %s61
    %p65 = scmp.eq.s32.totalorder %s25, 0
    %p66 = por %p64, %p65
    %p67 = scmp.ne.s32.totalorder %s59, %s61
    %p68 = scmp.eq.s32.totalorder %s30, 1
    %p69 = por %p67, %p68
    %p70 = scmp.ne.s32.totalorder %s61, %s62
    %p71 = scmp.eq.s32.totalorder %s30, 0
    %p72 = por %p70, %p71
    %p73 = scmp.ne.s32.totalorder %s61, %s62
    %p74 = scmp.eq.s32.totalorder %s31, 1
    %p75 = por %p73, %p74
    %p77 = scmp.ne.s32.totalorder %s62, %s76
    %p78 = scmp.eq.s32.totalorder %s31, 0
    %p79 = por %p77, %p78
    %s81 = sadd.s32 %s80, 1
    %p84 = scmp.eq.s32.totalorder %s25, 1
    %p85 = scmp.ne.s32.totalorder %s80, %s82
    %p86 = scmp.eq.s32.totalorder %s25, 0
    %p87 = por %p85, %p86
    %p88 = scmp.ne.s32.totalorder %s80, %s82
    %p89 = scmp.eq.s32.totalorder %s30, 1
    %p90 = por %p88, %p89
    %p91 = scmp.ne.s32.totalorder %s82, %s83
    %p92 = scmp.eq.s32.totalorder %s30, 0
    %p93 = por %p91, %p92
    %p94 = scmp.ne.s32.totalorder %s82, %s83
    %p95 = scmp.eq.s32.totalorder %s31, 1
    %p96 = por %p94, %p95
    %p98 = scmp.ne.s32.totalorder %s83, %s97
    %p99 = scmp.eq.s32.totalorder %s31, 0
    %p100 = por %p98, %p99
    %s102 = sadd.s32 %s101, 1
    %p105 = scmp.eq.s32.totalorder %s25, 1
    %p106 = scmp.ne.s32.totalorder %s101, %s103
    %p107 = scmp.eq.s32.totalorder %s25, 0
    %p108 = por %p106, %p107
    %p109 = scmp.ne.s32.totalorder %s101, %s103
    %p110 = scmp.eq.s32.totalorder %s30, 1
    %p111 = por %p109, %p110
    %p112 = scmp.ne.s32.totalorder %s103, %s104
    %p113 = scmp.eq.s32.totalorder %s30, 0
    %p114 = por %p112, %p113
    %p115 = scmp.ne.s32.totalorder %s103, %s104
    %p116 = scmp.eq.s32.totalorder %s31, 1
    %p117 = por %p115, %p116
    %p119 = scmp.ne.s32.totalorder %s104, %s118
    %p120 = scmp.eq.s32.totalorder %s31, 0
    %p121 = por %p119, %p120
    %s123 = sadd.s32 %s122, 1
    %p126 = scmp.eq.s32.totalorder %s25, 1
    %p127 = scmp.ne.s32.totalorder %s122, %s124
    %p128 = scmp.eq.s32.totalorder %s25, 0
    %p129 = por %p127, %p128
    %p130 = scmp.ne.s32.totalorder %s122, %s124
    %p131 = scmp.eq.s32.totalorder %s30, 1
    %p132 = por %p130, %p131
    %p133 = scmp.ne.s32.totalorder %s124, %s125
    %p134 = scmp.eq.s32.totalorder %s30, 0
    %p135 = por %p133, %p134
    %p136 = scmp.ne.s32.totalorder %s124, %s125
    %p137 = scmp.eq.s32.totalorder %s31, 1
    %p138 = por %p136, %p137
    %p140 = scmp.ne.s32.totalorder %s125, %s139
    %p141 = scmp.eq.s32.totalorder %s31, 0
    %p142 = por %p140, %p141
    %s144 = sadd.s32 %s143, 1
    %p147 = scmp.eq.s32.totalorder %s25, 1
    %p148 = scmp.ne.s32.totalorder %s143, %s145
    %p149 = scmp.eq.s32.totalorder %s25, 0
    %p150 = por %p148, %p149
    %p151 = scmp.ne.s32.totalorder %s143, %s145
    %p152 = scmp.eq.s32.totalorder %s30, 1
    %p153 = por %p151, %p152
    %p154 = scmp.ne.s32.totalorder %s145, %s146
    %p155 = scmp.eq.s32.totalorder %s30, 0
    %p156 = por %p154, %p155
    %p157 = scmp.ne.s32.totalorder %s145, %s146
    %p158 = scmp.eq.s32.totalorder %s31, 1
    %p159 = por %p157, %p158
    %p161 = scmp.ne.s32.totalorder %s146, %s160
    %p162 = scmp.eq.s32.totalorder %s31, 0
    %p163 = por %p161, %p162
    %s165 = sadd.s32 %s164, 1
    %p168 = scmp.eq.s32.totalorder %s25, 1
    %p169 = scmp.ne.s32.totalorder %s164, %s166
    %p170 = scmp.eq.s32.totalorder %s25, 0
    %p171 = por %p169, %p170
    %p172 = scmp.ne.s32.totalorder %s164, %s166
    %p173 = scmp.eq.s32.totalorder %s30, 1
    %p174 = por %p172, %p173
    %p175 = scmp.ne.s32.totalorder %s166, %s167
    %p176 = scmp.eq.s32.totalorder %s30, 0
    %p177 = por %p175, %p176
    %p178 = scmp.ne.s32.totalorder %s166, %s167
    %p179 = scmp.eq.s32.totalorder %s31, 1
    %p180 = por %p178, %p179
    %p182 = scmp.ne.s32.totalorder %s167, %s181
    %p183 = scmp.eq.s32.totalorder %s31, 0
    %p184 = por %p182, %p183
    %s186 = sadd.s32 %s185, 1
    %p189 = scmp.eq.s32.totalorder %s25, 1
    %p190 = scmp.ne.s32.totalorder %s185, %s187
    %p191 = scmp.eq.s32.totalorder %s25, 0
    %p192 = por %p190, %p191
    %p193 = scmp.ne.s32.totalorder %s185, %s187
    %p194 = scmp.eq.s32.totalorder %s30, 1
    %p195 = por %p193, %p194
    %p196 = scmp.ne.s32.totalorder %s187, %s188
    %p197 = scmp.eq.s32.totalorder %s30, 0
    %p198 = por %p196, %p197
    %p199 = scmp.ne.s32.totalorder %s187, %s188
    %p200 = scmp.eq.s32.totalorder %s31, 1
    %p201 = por %p199, %p200
    %p203 = scmp.ne.s32.totalorder %s188, %s202
    %p204 = scmp.eq.s32.totalorder %s31, 0
    %p205 = por %p203, %p204
    %s207 = sadd.s32 %s206, 1
    %p210 = scmp.eq.s32.totalorder %s25, 1
    %p211 = scmp.ne.s32.totalorder %s206, %s208
    %p212 = scmp.eq.s32.totalorder %s25, 0
    %p213 = por %p211, %p212
    %p214 = scmp.ne.s32.totalorder %s206, %s208
    %p215 = scmp.eq.s32.totalorder %s30, 1
    %p216 = por %p214, %p215
    %p217 = scmp.ne.s32.totalorder %s208, %s209
    %p218 = scmp.eq.s32.totalorder %s30, 0
    %p219 = por %p217, %p218
    %p220 = scmp.ne.s32.totalorder %s208, %s209
    %p221 = scmp.eq.s32.totalorder %s31, 1
    %p222 = por %p220, %p221
    %p224 = scmp.ne.s32.totalorder %s209, %s223
    %p225 = scmp.eq.s32.totalorder %s31, 0
    %p226 = por %p224, %p225
    %s228 = sadd.s32 %s227, 1
    %p231 = scmp.eq.s32.totalorder %s25, 1
    %p232 = scmp.ne.s32.totalorder %s227, %s229
    %p233 = scmp.eq.s32.totalorder %s25, 0
    %p234 = por %p232, %p233
    %p235 = scmp.ne.s32.totalorder %s227, %s229
    %p236 = scmp.eq.s32.totalorder %s30, 1
    %p237 = por %p235, %p236
    %p238 = scmp.ne.s32.totalorder %s229, %s230
    %p239 = scmp.eq.s32.totalorder %s30, 0
    %p240 = por %p238, %p239
    %p241 = scmp.ne.s32.totalorder %s229, %s230
    %p242 = scmp.eq.s32.totalorder %s31, 1
    %p243 = por %p241, %p242
    %p245 = scmp.ne.s32.totalorder %s230, %s244
    %p246 = scmp.eq.s32.totalorder %s31, 0
    %p247 = por %p245, %p246
    %s249 = sadd.s32 %s248, 1
    %p252 = scmp.eq.s32.totalorder %s25, 1
    %p253 = scmp.ne.s32.totalorder %s248, %s250
    %p254 = scmp.eq.s32.totalorder %s25, 0
    %p255 = por %p253, %p254
    %p256 = scmp.ne.s32.totalorder %s248, %s250
    %p257 = scmp.eq.s32.totalorder %s30, 1
    %p258 = por %p256, %p257
    %p259 = scmp.ne.s32.totalorder %s250, %s251
    %p260 = scmp.eq.s32.totalorder %s30, 0
    %p261 = por %p259, %p260
    %p262 = scmp.ne.s32.totalorder %s250, %s251
    %p263 = scmp.eq.s32.totalorder %s31, 1
    %p264 = por %p262, %p263
    %p266 = scmp.ne.s32.totalorder %s251, %s265
    %p267 = scmp.eq.s32.totalorder %s31, 0
    %p268 = por %p266, %p267
    %s270 = sadd.s32 %s269, 1
    %p273 = scmp.eq.s32.totalorder %s25, 1
    %p274 = scmp.ne.s32.totalorder %s269, %s271
    %p275 = scmp.eq.s32.totalorder %s25, 0
    %p276 = por %p274, %p275
    %p277 = scmp.ne.s32.totalorder %s269, %s271
    %p278 = scmp.eq.s32.totalorder %s30, 1
    %p279 = por %p277, %p278
    %p280 = scmp.ne.s32.totalorder %s271, %s272
    %p281 = scmp.eq.s32.totalorder %s30, 0
    %p282 = por %p280, %p281
    %p283 = scmp.ne.s32.totalorder %s271, %s272
    %p284 = scmp.eq.s32.totalorder %s31, 1
    %p285 = por %p283, %p284
    %p287 = scmp.ne.s32.totalorder %s272, %s286
    %p288 = scmp.eq.s32.totalorder %s31, 0
    %p289 = por %p287, %p288
    %s291 = sadd.s32 %s290, 1
    %p294 = scmp.eq.s32.totalorder %s25, 1
    %p295 = scmp.ne.s32.totalorder %s290, %s292
    %p296 = scmp.eq.s32.totalorder %s25, 0
    %p297 = por %p295, %p296
    %p298 = scmp.ne.s32.totalorder %s290, %s292
    %p299 = scmp.eq.s32.totalorder %s30, 1
    %p300 = por %p298, %p299
    %p301 = scmp.ne.s32.totalorder %s292, %s293
    %p302 = scmp.eq.s32.totalorder %s30, 0
    %p303 = por %p301, %p302
    %p304 = scmp.ne.s32.totalorder %s292, %s293
    %p305 = scmp.eq.s32.totalorder %s31, 1
    %p306 = por %p304, %p305
    %p308 = scmp.ne.s32.totalorder %s293, %s307
    %p309 = scmp.eq.s32.totalorder %s31, 0
    %p310 = por %p308, %p309
    %s312 = sadd.s32 %s311, 1
    %p315 = scmp.eq.s32.totalorder %s25, 1
    %p316 = scmp.ne.s32.totalorder %s311, %s313
    %p317 = scmp.eq.s32.totalorder %s25, 0
    %p318 = por %p316, %p317
    %p319 = scmp.ne.s32.totalorder %s311, %s313
    %p320 = scmp.eq.s32.totalorder %s30, 1
    %p321 = por %p319, %p320
    %p322 = scmp.ne.s32.totalorder %s313, %s314
    %p323 = scmp.eq.s32.totalorder %s30, 0
    %p324 = por %p322, %p323
    %p325 = scmp.ne.s32.totalorder %s313, %s314
    %p326 = scmp.eq.s32.totalorder %s31, 1
    %p327 = por %p325, %p326
    %p329 = scmp.ne.s32.totalorder %s314, %s328
    %p330 = scmp.eq.s32.totalorder %s31, 0
    %p331 = por %p329, %p330
    %s333 = sadd.s32 %s332, 1
    %p336 = scmp.eq.s32.totalorder %s25, 1
    %p337 = scmp.ne.s32.totalorder %s332, %s334
    %p338 = scmp.eq.s32.totalorder %s25, 0
    %p339 = por %p337, %p338
    %p340 = scmp.ne.s32.totalorder %s332, %s334
    %p341 = scmp.eq.s32.totalorder %s30, 1
    %p342 = por %p340, %p341
    %p343 = scmp.ne.s32.totalorder %s334, %s335
    %p344 = scmp.eq.s32.totalorder %s30, 0
    %p345 = por %p343, %p344
    %p346 = scmp.ne.s32.totalorder %s334, %s335
    %p347 = scmp.eq.s32.totalorder %s31, 1
    %p348 = por %p346, %p347
    %p350 = scmp.ne.s32.totalorder %s335, %s349
    %p351 = scmp.eq.s32.totalorder %s31, 0
    %p352 = por %p350, %p351
    %s354 = sadd.s32 %s353, 1
    %p357 = scmp.eq.s32.totalorder %s25, 1
    %p358 = scmp.ne.s32.totalorder %s353, %s355
    %p359 = scmp.eq.s32.totalorder %s25, 0
    %p360 = por %p358, %p359
    %p361 = scmp.ne.s32.totalorder %s353, %s355
    %p362 = scmp.eq.s32.totalorder %s30, 1
    %p363 = por %p361, %p362
    %p364 = scmp.ne.s32.totalorder %s355, %s356
    %p365 = scmp.eq.s32.totalorder %s30, 0
    %p366 = por %p364, %p365
    %p367 = scmp.ne.s32.totalorder %s355, %s356
    %p368 = scmp.eq.s32.totalorder %s31, 1
    %p369 = por %p367, %p368
    %p371 = scmp.ne.s32.totalorder %s356, %s370
    %p372 = scmp.eq.s32.totalorder %s31, 0
    %p373 = por %p371, %p372
    %s375 = sadd.s32 %s374, 1
    %p378 = scmp.eq.s32.totalorder %s25, 1
    %p379 = scmp.ne.s32.totalorder %s374, %s376
    %p380 = scmp.eq.s32.totalorder %s25, 0
    %p381 = por %p379, %p380
    %p382 = scmp.ne.s32.totalorder %s374, %s376
    %p383 = scmp.eq.s32.totalorder %s30, 1
    %p384 = por %p382, %p383
    %p385 = scmp.ne.s32.totalorder %s376, %s377
    %p386 = scmp.eq.s32.totalorder %s30, 0
    %p387 = por %p385, %p386
    %p388 = scmp.ne.s32.totalorder %s376, %s377
    %p389 = scmp.eq.s32.totalorder %s31, 1
    %p390 = por %p388, %p389
    %p392 = scmp.ne.s32.totalorder %s377, %s391
    %p393 = scmp.eq.s32.totalorder %s31, 0
    %p394 = por %p392, %p393
    %s396 = sadd.s32 %s395, 1
    %p399 = scmp.eq.s32.totalorder %s25, 1
    %p400 = scmp.ne.s32.totalorder %s395, %s397
    %p401 = scmp.eq.s32.totalorder %s25, 0
    %p402 = por %p400, %p401
    %p403 = scmp.ne.s32.totalorder %s395, %s397
    %p404 = scmp.eq.s32.totalorder %s30, 1
    %p405 = por %p403, %p404
    %p406 = scmp.ne.s32.totalorder %s397, %s398
    %p407 = scmp.eq.s32.totalorder %s30, 0
    %p408 = por %p406, %p407
    %p409 = scmp.ne.s32.totalorder %s397, %s398
    %p410 = scmp.eq.s32.totalorder %s31, 1
    %p411 = por %p409, %p410
    %p413 = scmp.ne.s32.totalorder %s398, %s412
    %p414 = scmp.eq.s32.totalorder %s31, 0
    %p415 = por %p413, %p414
    %s417 = sadd.s32 %s416, 1
    %p420 = scmp.eq.s32.totalorder %s25, 1
    %p421 = scmp.ne.s32.totalorder %s416, %s418
    %p422 = scmp.eq.s32.totalorder %s25, 0
    %p423 = por %p421, %p422
    %p424 = scmp.ne.s32.totalorder %s416, %s418
    %p425 = scmp.eq.s32.totalorder %s30, 1
    %p426 = por %p424, %p425
    %p427 = scmp.ne.s32.totalorder %s418, %s419
    %p428 = scmp.eq.s32.totalorder %s30, 0
    %p429 = por %p427, %p428
    %p430 = scmp.ne.s32.totalorder %s418, %s419
    %p431 = scmp.eq.s32.totalorder %s31, 1
    %p432 = por %p430, %p431
    %p434 = scmp.ne.s32.totalorder %s419, %s433
    %p435 = scmp.eq.s32.totalorder %s31, 0
    %p436 = por %p434, %p435
    %s437 = ssub.s32 %s25, %s32
    %p438 = scmp.eq.s32.totalorder %s437, 0
    %s440 = sadd.s32 %s439, 1
    %s441 = scalar_select %p438, %s439, %s440
    %p444 = pneg %p438
    %p445 = scmp.eq.s32.totalorder %s25, 1
    %p446 = por %p444, %p445
    %p447 = scmp.ne.s32.totalorder %s439, %s442
    %p448 = scmp.eq.s32.totalorder %s25, 0
    %p449 = por %p447, %p448
    %p450 = scmp.ne.s32.totalorder %s439, %s442
    %p451 = scmp.eq.s32.totalorder %s30, 1
    %p452 = por %p450, %p451
    %p453 = scmp.ne.s32.totalorder %s442, %s443
    %p454 = scmp.eq.s32.totalorder %s30, 0
    %p455 = por %p453, %p454
    %p456 = scmp.ne.s32.totalorder %s442, %s443
    %p457 = scmp.eq.s32.totalorder %s31, 1
    %p458 = por %p456, %p457
    %p460 = scmp.ne.s32.totalorder %s443, %s459
    %p461 = scmp.eq.s32.totalorder %s31, 0
    %p462 = por %p460, %p461
    %p463 = scmp.le.s32.totalorder 1, %s25
    %p464 = scmp.lt.s32.totalorder %s25, 3
    %p465 = pnand %p463, %p464
    %p466 = pneg %p465
    // Predicated region
    $region9: #{medclip_forward.1} parent=5 // pred_check
      _
    $region10: #{medclip_forward.1} parent=5 // pred_check_branch
      %468 = sbr.rel (%p465) target = $region12
    $region11: #{medclip_forward.1} parent=5 // pred_region
      %s469 = ssub.s32 %s25, 1
      // Predicated region
      $region13: #{medclip_forward.1} parent=11 // pred_check
        %p470 = pneg %p72
      $region14: #{medclip_forward.1} parent=11 // pred_check_branch
        %472 = sbr.rel (%p470) target = $region16
      $region15: #{medclip_forward.1} parent=11 // pred_region
        _
      $region16: #{medclip_forward.1} parent=11 // pred_fallthru
        _
      // Predicated region
      $region17: #{medclip_forward.1} parent=11 // pred_check
        %p473 = pneg %p93
      $region18: #{medclip_forward.1} parent=11 // pred_check_branch
        %475 = sbr.rel (%p473) target = $region20
      $region19: #{medclip_forward.1} parent=11 // pred_region
        _
      $region20: #{medclip_forward.1} parent=11 // pred_fallthru
        _
      // Predicated region
      $region21: #{medclip_forward.1} parent=11 // pred_check
        %p476 = pneg %p114
      $region22: #{medclip_forward.1} parent=11 // pred_check_branch
        %478 = sbr.rel (%p476) target = $region24
      $region23: #{medclip_forward.1} parent=11 // pred_region
        _
      $region24: #{medclip_forward.1} parent=11 // pred_fallthru
        _
      // Predicated region
      $region25: #{medclip_forward.1} parent=11 // pred_check
        %p479 = pneg %p135
      $region26: #{medclip_forward.1} parent=11 // pred_check_branch
        %481 = sbr.rel (%p479) target = $region28
      $region27: #{medclip_forward.1} parent=11 // pred_region
        _
      $region28: #{medclip_forward.1} parent=11 // pred_fallthru
        _
      // Predicated region
      $region29: #{medclip_forward.1} parent=11 // pred_check
        %p482 = pneg %p156
      $region30: #{medclip_forward.1} parent=11 // pred_check_branch
        %484 = sbr.rel (%p482) target = $region32
      $region31: #{medclip_forward.1} parent=11 // pred_region
        _
      $region32: #{medclip_forward.1} parent=11 // pred_fallthru
        _
      // Predicated region
      $region33: #{medclip_forward.1} parent=11 // pred_check
        %p485 = pneg %p177
      $region34: #{medclip_forward.1} parent=11 // pred_check_branch
        %487 = sbr.rel (%p485) target = $region36
      $region35: #{medclip_forward.1} parent=11 // pred_region
        _
      $region36: #{medclip_forward.1} parent=11 // pred_fallthru
        _
      // Predicated region
      $region37: #{medclip_forward.1} parent=11 // pred_check
        %p488 = pneg %p198
      $region38: #{medclip_forward.1} parent=11 // pred_check_branch
        %490 = sbr.rel (%p488) target = $region40
      $region39: #{medclip_forward.1} parent=11 // pred_region
        _
      $region40: #{medclip_forward.1} parent=11 // pred_fallthru
        _
      // Predicated region
      $region41: #{medclip_forward.1} parent=11 // pred_check
        %p491 = pneg %p219
      $region42: #{medclip_forward.1} parent=11 // pred_check_branch
        %493 = sbr.rel (%p491) target = $region44
      $region43: #{medclip_forward.1} parent=11 // pred_region
        _
      $region44: #{medclip_forward.1} parent=11 // pred_fallthru
        _
      // Predicated region
      $region45: #{medclip_forward.1} parent=11 // pred_check
        %p494 = pneg %p240
      $region46: #{medclip_forward.1} parent=11 // pred_check_branch
        %496 = sbr.rel (%p494) target = $region48
      $region47: #{medclip_forward.1} parent=11 // pred_region
        _
      $region48: #{medclip_forward.1} parent=11 // pred_fallthru
        _
      // Predicated region
      $region49: #{medclip_forward.1} parent=11 // pred_check
        %p497 = pneg %p261
      $region50: #{medclip_forward.1} parent=11 // pred_check_branch
        %499 = sbr.rel (%p497) target = $region52
      $region51: #{medclip_forward.1} parent=11 // pred_region
        _
      $region52: #{medclip_forward.1} parent=11 // pred_fallthru
        _
      // Predicated region
      $region53: #{medclip_forward.1} parent=11 // pred_check
        %p500 = pneg %p282
      $region54: #{medclip_forward.1} parent=11 // pred_check_branch
        %502 = sbr.rel (%p500) target = $region56
      $region55: #{medclip_forward.1} parent=11 // pred_region
        _
      $region56: #{medclip_forward.1} parent=11 // pred_fallthru
        _
      // Predicated region
      $region57: #{medclip_forward.1} parent=11 // pred_check
        %p503 = pneg %p303
      $region58: #{medclip_forward.1} parent=11 // pred_check_branch
        %505 = sbr.rel (%p503) target = $region60
      $region59: #{medclip_forward.1} parent=11 // pred_region
        _
      $region60: #{medclip_forward.1} parent=11 // pred_fallthru
        _
      // Predicated region
      $region61: #{medclip_forward.1} parent=11 // pred_check
        %p506 = pneg %p324
      $region62: #{medclip_forward.1} parent=11 // pred_check_branch
        %508 = sbr.rel (%p506) target = $region64
      $region63: #{medclip_forward.1} parent=11 // pred_region
        _
      $region64: #{medclip_forward.1} parent=11 // pred_fallthru
        _
      // Predicated region
      $region65: #{medclip_forward.1} parent=11 // pred_check
        %p509 = pneg %p345
      $region66: #{medclip_forward.1} parent=11 // pred_check_branch
        %511 = sbr.rel (%p509) target = $region68
      $region67: #{medclip_forward.1} parent=11 // pred_region
        _
      $region68: #{medclip_forward.1} parent=11 // pred_fallthru
        _
      // Predicated region
      $region69: #{medclip_forward.1} parent=11 // pred_check
        %p512 = pneg %p366
      $region70: #{medclip_forward.1} parent=11 // pred_check_branch
        %514 = sbr.rel (%p512) target = $region72
      $region71: #{medclip_forward.1} parent=11 // pred_region
        _
      $region72: #{medclip_forward.1} parent=11 // pred_fallthru
        _
      // Predicated region
      $region73: #{medclip_forward.1} parent=11 // pred_check
        %p515 = pneg %p387
      $region74: #{medclip_forward.1} parent=11 // pred_check_branch
        %517 = sbr.rel (%p515) target = $region76
      $region75: #{medclip_forward.1} parent=11 // pred_region
        _
      $region76: #{medclip_forward.1} parent=11 // pred_fallthru
        _
      // Predicated region
      $region77: #{medclip_forward.1} parent=11 // pred_check
        %p518 = pneg %p408
      $region78: #{medclip_forward.1} parent=11 // pred_check_branch
        %520 = sbr.rel (%p518) target = $region80
      $region79: #{medclip_forward.1} parent=11 // pred_region
        _
      $region80: #{medclip_forward.1} parent=11 // pred_fallthru
        _
      // Predicated region
      $region81: #{medclip_forward.1} parent=11 // pred_check
        %p521 = pneg %p429
      $region82: #{medclip_forward.1} parent=11 // pred_check_branch
        %523 = sbr.rel (%p521) target = $region84
      $region83: #{medclip_forward.1} parent=11 // pred_region
        _
      $region84: #{medclip_forward.1} parent=11 // pred_fallthru
        _
    $region12: #{medclip_forward.1} parent=5 // pred_fallthru
      _
    %p524 = scmp.lt.s32.totalorder %s25, 2
    // Predicated region
    $region85: #{medclip_forward.1} parent=5 // pred_check
      %p525 = pneg %p524
    $region86: #{medclip_forward.1} parent=5 // pred_check_branch
      %527 = sbr.rel (%p525) target = $region88
    $region87: #{medclip_forward.1} parent=5 // pred_region
      // Predicated region
      $region89: #{medclip_forward.1} parent=87 // pred_check
        %p528 = pneg %p45
      $region90: #{medclip_forward.1} parent=87 // pred_check_branch
        %530 = sbr.rel (%p528) target = $region92
      $region91: #{medclip_forward.1} parent=87 // pred_region
        %p531 = scmp.lt.s32.totalorder %s25, 1
        %s532 = scalar_select %p531, %s25, 1
        %s533 = smul.addr %s532, 2
        %s534 = smul.addr %s533, 8
        %s535 = scalar_lea.vmem %s0, %s534
      $region92: #{medclip_forward.1} parent=87 // pred_fallthru
        _
    $region88: #{medclip_forward.1} parent=5 // pred_fallthru
      _
    %p536 = scmp.le.s32.totalorder 1, %s25
    %p537 = scmp.lt.s32.totalorder %s25, 3
    %p538 = pnand %p536, %p537
    %p539 = pneg %p538
    // Predicated region
    $region93: #{medclip_forward.1} parent=5 // pred_check
      _
    $region94: #{medclip_forward.1} parent=5 // pred_check_branch
      %541 = sbr.rel (%p538) target = $region96
    $region95: #{medclip_forward.1} parent=5 // pred_region
      %s542 = ssub.s32 %s25, 1
      %p543 = scmp.lt.s32.totalorder %s30, 1
      %s544 = scalar_select %p543, %s30, 1
      %s545 = smul.addr %s544, 2
      %s546 = smul.addr %s545, 8
      %s547 = scalar_lea.vmem %s0, %s546
      %p548 = pneg %p51
      %p549 = pneg %p48
      %p550 = pneg %p72
      %p551 = pneg %p69
      %p552 = pneg %p93
      %p553 = pneg %p90
      %p554 = pneg %p114
      %p555 = pneg %p111
      %p556 = pneg %p135
      %p557 = pneg %p132
      %p558 = pneg %p156
      %p559 = pneg %p153
      %p560 = pneg %p177
      %p561 = pneg %p174
      %p562 = pneg %p198
      %p563 = pneg %p195
      %p564 = pneg %p219
      %p565 = pneg %p216
      %p566 = pneg %p240
      %p567 = pneg %p237
      %p568 = pneg %p261
      %p569 = pneg %p258
      %p570 = pneg %p282
      %p571 = pneg %p279
      %p572 = pneg %p303
      %p573 = pneg %p300
      %p574 = pneg %p324
      %p575 = pneg %p321
      %p576 = pneg %p345
      %p577 = pneg %p342
      %p578 = pneg %p366
      %p579 = pneg %p363
      %p580 = pneg %p387
      %p581 = pneg %p384
      %p582 = pneg %p408
      %p583 = pneg %p405
      %p584 = pneg %p429
      %p585 = pneg %p426
      %p586 = pneg %p455
      %p587 = pneg %p452
      %p588 = scmp.lt.s32.totalorder %s30, 1
      %s589 = scalar_select %p588, %s30, 1
      %s590 = smul.addr %s589, 4
      %s591 = scalar_lea.vmem %s19, %s590
      %p592 = scmp.lt.s32.totalorder %s30, 1
      %s593 = scalar_select %p592, %s30, 1
      %s594 = smul.addr %s593, 2
      %s595 = smul.addr %s594, 8
      %s596 = scalar_lea.vmem %s0, %s595
      %p597 = scmp.lt.s32.totalorder %s30, 1
      %s598 = scalar_select %p597, %s30, 1
      %s599 = smul.addr %s598, 4
      %s600 = scalar_lea.vmem %s19, %s599
      %v601 = vld [vmem:[%s596] sm:$0xff]
      %v602 = vld [vmem:[%s596 + $0x8] sm:$0xff]
      %v603 = vld [vmem:[%s1] sm:$0xff]
      %v604 = vld [vmem:[%s1 + $0x8] sm:$0xff]
      %v605 = vld [vmem:[%s1 + $0x10] sm:$0xff]
      %v606 = vld [vmem:[%s1 + $0x18] sm:$0xff]
      %v607 = vld [vmem:[%s1 + $0x20] sm:$0xff]
      %v608 = vld [vmem:[%s1 + $0x28] sm:$0xff]
      %v609 = vld [vmem:[%s3] sm:$0xff]
      %v610 = vld [vmem:[%s3 + $0x8] sm:$0xff]
      %v611 = vld [vmem:[%s2] sm:$0x1]
      %v613 = vperm.slane %v611, 0
      %vm615 = vcmask 392192
      %v617 = vsel %vm615, %v601, 0
      %v620 = vsel %vm615, %v602, 0
      %622 = vmatpush.msra.mxu0 0.0
      %623 = vmatpush.msra.mxu0 0.0
      %624 = vmatpush.msra.mxu0 0.0
      %625 = vmatpush.msra.mxu0 0.0
      %626 = vmatpush.msra.mxu0 0.0
      %627 = vmatpush.msra.mxu0 0.0
      %628 = vmatpush.msra.mxu0 0.0
      %629 = vmatpush.msra.mxu0 0.0
      %630 = vmatpush.msra.mxu0 0.0
      %631 = vmatpush.msra.mxu0 0.0
      %632 = vmatpush.msra.mxu0 %v608
      %633 = vmatpush.msra.mxu0 %v607
      %634 = vmatpush.msra.mxu0 %v606
      %635 = vmatpush.msra.mxu0 %v605
      %636 = vmatpush.msra.mxu0 %v604
      %637 = vmatpush.msra.mxu0 %v603
      %638 = vmatmul.f32.gmra.mxu0 %v617
      %v639 = vpop.f32.mrf.mxu0
      %v640 = vadd.f32 %v613, %v639
      %641 = vmatmul.f32.gmra.mxu0 %v620
      %v642 = vpop.f32.mrf.mxu0
      %v643 = vadd.f32 %v613, %v642
      %644 = vdwg.mxu0
      %v645 = vadd.f32 %v640, %v609
      %v646 = vadd.f32 %v643, %v610
      %v647 = vld [vmem:[%s4] sm:$0x1]
      %v648 = vld [vmem:[%s5] sm:$0x1]
      %vm649 = vcmask 261120
      %v650 = vsel %vm649, %v645, 0.0
      %651 = vadd.xlane.f32.xlu0 %v650
      %v652 = vpop.xlane.xlu0 %651
      %v653 = vsel %vm649, %v646, 0.0
      %654 = vadd.xlane.f32.xlu0 %v653
      %v655 = vpop.xlane.xlu0 %654
      %v656 = vrcp.pop 32.0
      %v657 = vmul.f32 32.0, %v656
      %v658 = vsub.f32 1.0, %v657
      %v659 = vmul.f32 %v656, %v658
      %v660 = vadd.f32 %v656, %v659
      %vm661 = vweird.f32 %v656
      %v662 = vsel %vm661, %v656, %v660
      %v663 = vmul.f32 %v652, %v662
      %v664 = vmul.f32 %v655, %v662
      %v665 = vsub.f32 %v645, %v663
      %v666 = vsub.f32 %v646, %v664
      %v667 = vmul.f32 %v665, %v665
      %v668 = vmul.f32 %v666, %v666
      %v669 = vsel %vm649, %v667, 0.0
      %670 = vadd.xlane.f32.xlu0 %v669
      %v671 = vpop.xlane.xlu0 %670
      %v672 = vsel %vm649, %v668, 0.0
      %673 = vadd.xlane.f32.xlu0 %v672
      %v674 = vpop.xlane.xlu0 %673
      %v675 = vmul.f32 %v671, %v662
      %v676 = vmul.f32 %v674, %v662
      %v677 = vadd.f32 %v675, 1e-05
      %v678 = vadd.f32 %v676, 1e-05
      %v679 = vrsqrt.pop %v677
      %v680 = vmul.f32 %v679, %v677
      %v681 = vmul.f32 %v680, %v679
      %v682 = vmul.f32 0.5, %v681
      %v683 = vsub.f32 1.5, %v682
      %v684 = vmul.f32 %v679, %v683
      %vm685 = vweird.f32 %v677
      %vm686 = vweird.f32 %v679
      %vm687 = vmor %vm685, %vm686
      %v688 = vsel %vm687, %v679, %v684
      %v689 = vrsqrt.pop %v678
      %v690 = vmul.f32 %v689, %v678
      %v691 = vmul.f32 %v690, %v689
      %v692 = vmul.f32 0.5, %v691
      %v693 = vsub.f32 1.5, %v692
      %v694 = vmul.f32 %v689, %v693
      %vm695 = vweird.f32 %v678
      %vm696 = vweird.f32 %v689
      %vm697 = vmor %vm695, %vm696
      %v698 = vsel %vm697, %v689, %v694
      %v699 = vmul.f32 %v665, %v688
      %v700 = vmul.f32 %v666, %v698
      %v702 = vperm.slane %v647, 0
      %v704 = vmul.f32 %v699, %v702
      %v705 = vmul.f32 %v700, %v702
      %v707 = vperm.slane %v648, 0
      %v709 = vadd.f32 %v704, %v707
      %v710 = vadd.f32 %v705, %v707
      %v711 = vld [vmem:[%s6] sm:$0xff]
      %v712 = vld [vmem:[%s6 + $0x8] sm:$0xff]
      %v713 = vld [vmem:[%s6 + $0x10] sm:$0xff]
      %v714 = vld [vmem:[%s6 + $0x18] sm:$0xff]
      %v715 = vld [vmem:[%s7] sm:$0x1]
      %v717 = vperm.slane %v715, 0
      %v720 = vsel %vm649, %v709, 0
      %v723 = vsel %vm649, %v710, 0
      %725 = vmatpush.msra.mxu0 0.0
      %726 = vmatpush.msra.mxu0 0.0
      %727 = vmatpush.msra.mxu0 0.0
      %728 = vmatpush.msra.mxu0 0.0
      %729 = vmatpush.msra.mxu0 0.0
      %730 = vmatpush.msra.mxu0 0.0
      %731 = vmatpush.msra.mxu0 0.0
      %732 = vmatpush.msra.mxu0 0.0
      %733 = vmatpush.msra.mxu0 0.0
      %734 = vmatpush.msra.mxu0 0.0
      %735 = vmatpush.msra.mxu0 0.0
      %736 = vmatpush.msra.mxu0 0.0
      %737 = vmatpush.msra.mxu0 %v714
      %738 = vmatpush.msra.mxu0 %v713
      %739 = vmatpush.msra.mxu0 %v712
      %740 = vmatpush.msra.mxu0 %v711
      %741 = vmatmul.f32.gmra.mxu0 %v720
      %v742 = vpop.f32.mrf.mxu0
      %v743 = vadd.f32 %v717, %v742
      %744 = vmatmul.f32.gmra.mxu0 %v723
      %v745 = vpop.f32.mrf.mxu0
      %v746 = vadd.f32 %v717, %v745
      %747 = vdwg.mxu0
      %750 = vrot.lane.b32.xlu0 %v743, 96
      %v751 = vpop.permute.xlu0 %750
      %752 = vrot.lane.b32.xlu0 %v746, 96
      %v753 = vpop.permute.xlu0 %752
      %vm754 = vcmask 64512
      %v755 = vsel %vm754, %v743, 0
      %v757 = vsel %vm754, %v746, 0
      %v759 = vsel %vm754, %v751, 0
      %v761 = vsel %vm754, %v753, 0
      %763 = vmatpush.xpose.msra.mxu0 0.0
      %764 = vmatpush.xpose.msra.mxu0 0.0
      %765 = vmatpush.xpose.msra.mxu0 0.0
      %766 = vmatpush.xpose.msra.mxu0 0.0
      %767 = vmatpush.xpose.msra.mxu0 0.0
      %768 = vmatpush.xpose.msra.mxu0 0.0
      %769 = vmatpush.xpose.msra.mxu0 0.0
      %770 = vmatpush.xpose.msra.mxu0 0.0
      %771 = vmatpush.xpose.msra.mxu0 0.0
      %772 = vmatpush.xpose.msra.mxu0 0.0
      %773 = vmatpush.xpose.msra.mxu0 0.0
      %774 = vmatpush.xpose.msra.mxu0 0.0
      %775 = vmatpush.xpose.msra.mxu0 0.0
      %776 = vmatpush.xpose.msra.mxu0 0.0
      %777 = vmatpush.xpose.msra.mxu0 %v761
      %778 = vmatpush.xpose.msra.mxu0 %v759
      %779 = vmatmul.f32.gmra.mxu0 %v755
      %v780 = vpop.f32.mrf.mxu0
      %v781 = vadd.f32 0.0, %v780
      %782 = vmatmul.f32.gmra.mxu0 %v757
      %v783 = vpop.f32.mrf.mxu0
      %v784 = vadd.f32 0.0, %v783
      %785 = vdwg.mxu0
      %vm786 = vcmask 130048
      %v787 = vsel %vm786, %v781, -inf
      %788 = vmax.xlane.f32.xlu0 %v787
      %v789 = vpop.xlane.xlu0 %788
      %v790 = vsel %vm786, %v784, -inf
      %791 = vmax.xlane.f32.xlu0 %v790
      %v792 = vpop.xlane.xlu0 %791
      %v793 = vsub.f32 %v781, %v789
      %v794 = vsub.f32 %v784, %v792
      %v795 = vmul.f32 %v793, 1.442695
      %v796 = vpow.pop %v795
      %v797 = vmul.f32 %v794, 1.442695
      %v798 = vpow.pop %v797
      %v799 = vsel %vm786, %v796, 0.0
      %800 = vadd.xlane.f32.xlu0 %v799
      %v801 = vpop.xlane.xlu0 %800
      %v802 = vsel %vm786, %v798, 0.0
      %803 = vadd.xlane.f32.xlu0 %v802
      %v804 = vpop.xlane.xlu0 %803
      %v805 = vrcp.pop %v801
      %v806 = vrcp.pop %v804
      %v807 = vmul.f32 %v796, %v805
      %v808 = vmul.f32 %v798, %v806
      %809 = vrot.lane.b32.xlu0 %v743, 64
      %v810 = vpop.permute.xlu0 %809
      %811 = vrot.lane.b32.xlu0 %v746, 64
      %v812 = vpop.permute.xlu0 %811
      %v816 = vsel %vm786, %v807, 0
      %v819 = vsel %vm786, %v808, 0
      %821 = vmatpush.msra.mxu0 0.0
      %822 = vmatpush.msra.mxu0 0.0
      %823 = vmatpush.msra.mxu0 0.0
      %824 = vmatpush.msra.mxu0 0.0
      %825 = vmatpush.msra.mxu0 0.0
      %826 = vmatpush.msra.mxu0 0.0
      %827 = vmatpush.msra.mxu0 0.0
      %828 = vmatpush.msra.mxu0 0.0
      %829 = vmatpush.msra.mxu0 0.0
      %830 = vmatpush.msra.mxu0 0.0
      %831 = vmatpush.msra.mxu0 0.0
      %832 = vmatpush.msra.mxu0 0.0
      %833 = vmatpush.msra.mxu0 0.0
      %834 = vmatpush.msra.mxu0 0.0
      %835 = vmatpush.msra.mxu0 %v812
      %836 = vmatpush.msra.mxu0 %v810
      %837 = vmatmul.f32.gmra.mxu0 %v816
      %v838 = vpop.f32.mrf.mxu0
      %v839 = vadd.f32 0.0, %v838
      %840 = vmatmul.f32.gmra.mxu0 %v819
      %v841 = vpop.f32.mrf.mxu0
      %v842 = vadd.f32 0.0, %v841
      %843 = vdwg.mxu0
      %844 = vrot.lane.b32.xlu0 %v743, 120
      %v845 = vpop.permute.xlu0 %844
      %846 = vrot.lane.b32.xlu0 %v746, 120
      %v847 = vpop.permute.xlu0 %846
      %848 = vrot.lane.b32.xlu0 %v743, 88
      %v849 = vpop.permute.xlu0 %848
      %850 = vrot.lane.b32.xlu0 %v746, 88
      %v851 = vpop.permute.xlu0 %850
      %v852 = vsel %vm754, %v845, 0
      %v854 = vsel %vm754, %v847, 0
      %v856 = vsel %vm754, %v849, 0
      %v858 = vsel %vm754, %v851, 0
      %860 = vmatpush.xpose.msra.mxu0 0.0
      %861 = vmatpush.xpose.msra.mxu0 0.0
      %862 = vmatpush.xpose.msra.mxu0 0.0
      %863 = vmatpush.xpose.msra.mxu0 0.0
      %864 = vmatpush.xpose.msra.mxu0 0.0
      %865 = vmatpush.xpose.msra.mxu0 0.0
      %866 = vmatpush.xpose.msra.mxu0 0.0
      %867 = vmatpush.xpose.msra.mxu0 0.0
      %868 = vmatpush.xpose.msra.mxu0 0.0
      %869 = vmatpush.xpose.msra.mxu0 0.0
      %870 = vmatpush.xpose.msra.mxu0 0.0
      %871 = vmatpush.xpose.msra.mxu0 0.0
      %872 = vmatpush.xpose.msra.mxu0 0.0
      %873 = vmatpush.xpose.msra.mxu0 0.0
      %874 = vmatpush.xpose.msra.mxu0 %v858
      %875 = vmatpush.xpose.msra.mxu0 %v856
      %876 = vmatmul.f32.gmra.mxu0 %v852
      %v877 = vpop.f32.mrf.mxu0
      %v878 = vadd.f32 0.0, %v877
      %879 = vmatmul.f32.gmra.mxu0 %v854
      %v880 = vpop.f32.mrf.mxu0
      %v881 = vadd.f32 0.0, %v880
      %882 = vdwg.mxu0
      %v883 = vsel %vm786, %v878, -inf
      %884 = vmax.xlane.f32.xlu0 %v883
      %v885 = vpop.xlane.xlu0 %884
      %v886 = vsel %vm786, %v881, -inf
      %887 = vmax.xlane.f32.xlu0 %v886
      %v888 = vpop.xlane.xlu0 %887
      %v889 = vsub.f32 %v878, %v885
      %v890 = vsub.f32 %v881, %v888
      %v891 = vmul.f32 %v889, 1.442695
      %v892 = vpow.pop %v891
      %v893 = vmul.f32 %v890, 1.442695
      %v894 = vpow.pop %v893
      %v895 = vsel %vm786, %v892, 0.0
      %896 = vadd.xlane.f32.xlu0 %v895
      %v897 = vpop.xlane.xlu0 %896
      %v898 = vsel %vm786, %v894, 0.0
      %899 = vadd.xlane.f32.xlu0 %v898
      %v900 = vpop.xlane.xlu0 %899
      %v901 = vrcp.pop %v897
      %v902 = vrcp.pop %v900
      %v903 = vmul.f32 %v892, %v901
      %v904 = vmul.f32 %v894, %v902
      %905 = vrot.lane.b32.xlu0 %v743, 56
      %v906 = vpop.permute.xlu0 %905
      %907 = vrot.lane.b32.xlu0 %v746, 56
      %v908 = vpop.permute.xlu0 %907
      %v912 = vsel %vm786, %v903, 0
      %v915 = vsel %vm786, %v904, 0
      %917 = vmatpush.msra.mxu0 0.0
      %918 = vmatpush.msra.mxu0 0.0
      %919 = vmatpush.msra.mxu0 0.0
      %920 = vmatpush.msra.mxu0 0.0
      %921 = vmatpush.msra.mxu0 0.0
      %922 = vmatpush.msra.mxu0 0.0
      %923 = vmatpush.msra.mxu0 0.0
      %924 = vmatpush.msra.mxu0 0.0
      %925 = vmatpush.msra.mxu0 0.0
      %926 = vmatpush.msra.mxu0 0.0
      %927 = vmatpush.msra.mxu0 0.0
      %928 = vmatpush.msra.mxu0 0.0
      %929 = vmatpush.msra.mxu0 0.0
      %930 = vmatpush.msra.mxu0 0.0
      %931 = vmatpush.msra.mxu0 %v908
      %932 = vmatpush.msra.mxu0 %v906
      %933 = vmatmul.f32.gmra.mxu0 %v912
      %v934 = vpop.f32.mrf.mxu0
      %v935 = vadd.f32 0.0, %v934
      %936 = vmatmul.f32.gmra.mxu0 %v915
      %v937 = vpop.f32.mrf.mxu0
      %v938 = vadd.f32 0.0, %v937
      %939 = vdwg.mxu0
      %940 = vrot.lane.b32.xlu0 %v743, 112
      %v941 = vpop.permute.xlu0 %940
      %942 = vrot.lane.b32.xlu0 %v746, 112
      %v943 = vpop.permute.xlu0 %942
      %944 = vrot.lane.b32.xlu0 %v743, 80
      %v945 = vpop.permute.xlu0 %944
      %946 = vrot.lane.b32.xlu0 %v746, 80
      %v947 = vpop.permute.xlu0 %946
      %v948 = vsel %vm754, %v941, 0
      %v950 = vsel %vm754, %v943, 0
      %v952 = vsel %vm754, %v945, 0
      %v954 = vsel %vm754, %v947, 0
      %956 = vmatpush.xpose.msra.mxu0 0.0
      %957 = vmatpush.xpose.msra.mxu0 0.0
      %958 = vmatpush.xpose.msra.mxu0 0.0
      %959 = vmatpush.xpose.msra.mxu0 0.0
      %960 = vmatpush.xpose.msra.mxu0 0.0
      %961 = vmatpush.xpose.msra.mxu0 0.0
      %962 = vmatpush.xpose.msra.mxu0 0.0
      %963 = vmatpush.xpose.msra.mxu0 0.0
      %964 = vmatpush.xpose.msra.mxu0 0.0
      %965 = vmatpush.xpose.msra.mxu0 0.0
      %966 = vmatpush.xpose.msra.mxu0 0.0
      %967 = vmatpush.xpose.msra.mxu0 0.0
      %968 = vmatpush.xpose.msra.mxu0 0.0
      %969 = vmatpush.xpose.msra.mxu0 0.0
      %970 = vmatpush.xpose.msra.mxu0 %v954
      %971 = vmatpush.xpose.msra.mxu0 %v952
      %972 = vmatmul.f32.gmra.mxu0 %v948
      %v973 = vpop.f32.mrf.mxu0
      %v974 = vadd.f32 0.0, %v973
      %975 = vmatmul.f32.gmra.mxu0 %v950
      %v976 = vpop.f32.mrf.mxu0
      %v977 = vadd.f32 0.0, %v976
      %978 = vdwg.mxu0
      %v979 = vsel %vm786, %v974, -inf
      %980 = vmax.xlane.f32.xlu0 %v979
      %v981 = vpop.xlane.xlu0 %980
      %v982 = vsel %vm786, %v977, -inf
      %983 = vmax.xlane.f32.xlu0 %v982
      %v984 = vpop.xlane.xlu0 %983
      %v985 = vsub.f32 %v974, %v981
      %v986 = vsub.f32 %v977, %v984
      %v987 = vmul.f32 %v985, 1.442695
      %v988 = vpow.pop %v987
      %v989 = vmul.f32 %v986, 1.442695
      %v990 = vpow.pop %v989
      %v991 = vsel %vm786, %v988, 0.0
      %992 = vadd.xlane.f32.xlu0 %v991
      %v993 = vpop.xlane.xlu0 %992
      %v994 = vsel %vm786, %v990, 0.0
      %995 = vadd.xlane.f32.xlu0 %v994
      %v996 = vpop.xlane.xlu0 %995
      %v997 = vrcp.pop %v993
      %v998 = vrcp.pop %v996
      %v999 = vmul.f32 %v988, %v997
      %v1000 = vmul.f32 %v990, %v998
      %1001 = vrot.lane.b32.xlu0 %v743, 48
      %v1002 = vpop.permute.xlu0 %1001
      %1003 = vrot.lane.b32.xlu0 %v746, 48
      %v1004 = vpop.permute.xlu0 %1003
      %v1008 = vsel %vm786, %v999, 0
      %v1011 = vsel %vm786, %v1000, 0
      %1013 = vmatpush.msra.mxu0 0.0
      %1014 = vmatpush.msra.mxu0 0.0
      %1015 = vmatpush.msra.mxu0 0.0
      %1016 = vmatpush.msra.mxu0 0.0
      %1017 = vmatpush.msra.mxu0 0.0
      %1018 = vmatpush.msra.mxu0 0.0
      %1019 = vmatpush.msra.mxu0 0.0
      %1020 = vmatpush.msra.mxu0 0.0
      %1021 = vmatpush.msra.mxu0 0.0
      %1022 = vmatpush.msra.mxu0 0.0
      %1023 = vmatpush.msra.mxu0 0.0
      %1024 = vmatpush.msra.mxu0 0.0
      %1025 = vmatpush.msra.mxu0 0.0
      %1026 = vmatpush.msra.mxu0 0.0
      %1027 = vmatpush.msra.mxu0 %v1004
      %1028 = vmatpush.msra.mxu0 %v1002
      %1029 = vmatmul.f32.gmra.mxu0 %v1008
      %v1030 = vpop.f32.mrf.mxu0
      %v1031 = vadd.f32 0.0, %v1030
      %1032 = vmatmul.f32.gmra.mxu0 %v1011
      %v1033 = vpop.f32.mrf.mxu0
      %v1034 = vadd.f32 0.0, %v1033
      %1035 = vdwg.mxu0
      %1036 = vrot.lane.b32.xlu0 %v743, 104
      %v1037 = vpop.permute.xlu0 %1036
      %1038 = vrot.lane.b32.xlu0 %v746, 104
      %v1039 = vpop.permute.xlu0 %1038
      %1040 = vrot.lane.b32.xlu0 %v743, 72
      %v1041 = vpop.permute.xlu0 %1040
      %1042 = vrot.lane.b32.xlu0 %v746, 72
      %v1043 = vpop.permute.xlu0 %1042
      %v1044 = vsel %vm754, %v1037, 0
      %v1046 = vsel %vm754, %v1039, 0
      %v1048 = vsel %vm754, %v1041, 0
      %v1050 = vsel %vm754, %v1043, 0
      %1052 = vmatpush.xpose.msra.mxu0 0.0
      %1053 = vmatpush.xpose.msra.mxu0 0.0
      %1054 = vmatpush.xpose.msra.mxu0 0.0
      %1055 = vmatpush.xpose.msra.mxu0 0.0
      %1056 = vmatpush.xpose.msra.mxu0 0.0
      %1057 = vmatpush.xpose.msra.mxu0 0.0
      %1058 = vmatpush.xpose.msra.mxu0 0.0
      %1059 = vmatpush.xpose.msra.mxu0 0.0
      %1060 = vmatpush.xpose.msra.mxu0 0.0
      %1061 = vmatpush.xpose.msra.mxu0 0.0
      %1062 = vmatpush.xpose.msra.mxu0 0.0
      %1063 = vmatpush.xpose.msra.mxu0 0.0
      %1064 = vmatpush.xpose.msra.mxu0 0.0
      %1065 = vmatpush.xpose.msra.mxu0 0.0
      %1066 = vmatpush.xpose.msra.mxu0 %v1050
      %1067 = vmatpush.xpose.msra.mxu0 %v1048
      %1068 = vmatmul.f32.gmra.mxu0 %v1044
      %v1069 = vpop.f32.mrf.mxu0
      %v1070 = vadd.f32 0.0, %v1069
      %1071 = vmatmul.f32.gmra.mxu0 %v1046
      %v1072 = vpop.f32.mrf.mxu0
      %v1073 = vadd.f32 0.0, %v1072
      %1074 = vdwg.mxu0
      %v1075 = vsel %vm786, %v1070, -inf
      %1076 = vmax.xlane.f32.xlu0 %v1075
      %v1077 = vpop.xlane.xlu0 %1076
      %v1078 = vsel %vm786, %v1073, -inf
      %1079 = vmax.xlane.f32.xlu0 %v1078
      %v1080 = vpop.xlane.xlu0 %1079
      %v1081 = vsub.f32 %v1070, %v1077
      %v1082 = vsub.f32 %v1073, %v1080
      %v1083 = vmul.f32 %v1081, 1.442695
      %v1084 = vpow.pop %v1083
      %v1085 = vmul.f32 %v1082, 1.442695
      %v1086 = vpow.pop %v1085
      %v1087 = vsel %vm786, %v1084, 0.0
      %1088 = vadd.xlane.f32.xlu0 %v1087
      %v1089 = vpop.xlane.xlu0 %1088
      %v1090 = vsel %vm786, %v1086, 0.0
      %1091 = vadd.xlane.f32.xlu0 %v1090
      %v1092 = vpop.xlane.xlu0 %1091
      %v1093 = vrcp.pop %v1089
      %v1094 = vrcp.pop %v1092
      %v1095 = vmul.f32 %v1084, %v1093
      %v1096 = vmul.f32 %v1086, %v1094
      %1097 = vrot.lane.b32.xlu0 %v743, 40
      %v1098 = vpop.permute.xlu0 %1097
      %1099 = vrot.lane.b32.xlu0 %v746, 40
      %v1100 = vpop.permute.xlu0 %1099
      %v1104 = vsel %vm786, %v1095, 0
      %v1107 = vsel %vm786, %v1096, 0
      %1109 = vmatpush.msra.mxu0 0.0
      %1110 = vmatpush.msra.mxu0 0.0
      %1111 = vmatpush.msra.mxu0 0.0
      %1112 = vmatpush.msra.mxu0 0.0
      %1113 = vmatpush.msra.mxu0 0.0
      %1114 = vmatpush.msra.mxu0 0.0
      %1115 = vmatpush.msra.mxu0 0.0
      %1116 = vmatpush.msra.mxu0 0.0
      %1117 = vmatpush.msra.mxu0 0.0
      %1118 = vmatpush.msra.mxu0 0.0
      %1119 = vmatpush.msra.mxu0 0.0
      %1120 = vmatpush.msra.mxu0 0.0
      %1121 = vmatpush.msra.mxu0 0.0
      %1122 = vmatpush.msra.mxu0 0.0
      %1123 = vmatpush.msra.mxu0 %v1100
      %1124 = vmatpush.msra.mxu0 %v1098
      %1125 = vmatmul.f32.gmra.mxu0 %v1104
      %v1126 = vpop.f32.mrf.mxu0
      %v1127 = vadd.f32 0.0, %v1126
      %1128 = vmatmul.f32.gmra.mxu0 %v1107
      %v1129 = vpop.f32.mrf.mxu0
      %v1130 = vadd.f32 0.0, %v1129
      %1131 = vdwg.mxu0
      %1134 = vrot.lane.b32.xlu0 %v935, 8
      %v1135 = vpop.permute.xlu0 %1134
      %1136 = vrot.lane.b32.xlu0 %v938, 8
      %v1137 = vpop.permute.xlu0 %1136
      %1142 = vrot.lane.b32.xlu0 %v1031, 16
      %v1143 = vpop.permute.xlu0 %1142
      %1144 = vrot.lane.b32.xlu0 %v1034, 16
      %v1145 = vpop.permute.xlu0 %1144
      %1150 = vrot.lane.b32.xlu0 %v1127, 24
      %v1151 = vpop.permute.xlu0 %1150
      %1152 = vrot.lane.b32.xlu0 %v1130, 24
      %v1153 = vpop.permute.xlu0 %1152
      %v1156 = vsel %vm754, %v839, %v1135
      %v1157 = vsel %vm754, %v842, %v1137
      %v1158 = vsel %vm786, %v1156, %v1143
      %v1159 = vsel %vm786, %v1157, %v1145
      %vm1160 = vcmask 195584
      %v1161 = vsel %vm1160, %v1158, %v1151
      %v1162 = vsel %vm1160, %v1159, %v1153
      %v1163 = vld [vmem:[%s8] sm:$0xff]
      %v1164 = vld [vmem:[%s8 + $0x8] sm:$0xff]
      %v1165 = vld [vmem:[%s8 + $0x10] sm:$0xff]
      %v1166 = vld [vmem:[%s8 + $0x18] sm:$0xff]
      %v1167 = vld [vmem:[%s9] sm:$0x1]
      %v1169 = vperm.slane %v1167, 0
      %v1172 = vsel %vm649, %v1161, 0
      %v1175 = vsel %vm649, %v1162, 0
      %1177 = vmatpush.msra.mxu0 0.0
      %1178 = vmatpush.msra.mxu0 0.0
      %1179 = vmatpush.msra.mxu0 0.0
      %1180 = vmatpush.msra.mxu0 0.0
      %1181 = vmatpush.msra.mxu0 0.0
      %1182 = vmatpush.msra.mxu0 0.0
      %1183 = vmatpush.msra.mxu0 0.0
      %1184 = vmatpush.msra.mxu0 0.0
      %1185 = vmatpush.msra.mxu0 0.0
      %1186 = vmatpush.msra.mxu0 0.0
      %1187 = vmatpush.msra.mxu0 0.0
      %1188 = vmatpush.msra.mxu0 0.0
      %1189 = vmatpush.msra.mxu0 %v1166
      %1190 = vmatpush.msra.mxu0 %v1165
      %1191 = vmatpush.msra.mxu0 %v1164
      %1192 = vmatpush.msra.mxu0 %v1163
      %1193 = vmatmul.f32.gmra.mxu0 %v1172
      %v1194 = vpop.f32.mrf.mxu0
      %v1195 = vadd.f32 %v1169, %v1194
      %1196 = vmatmul.f32.gmra.mxu0 %v1175
      %v1197 = vpop.f32.mrf.mxu0
      %v1198 = vadd.f32 %v1169, %v1197
      %1199 = vdwg.mxu0
      %v1200 = vadd.f32 %v645, %v1195
      %v1201 = vadd.f32 %v646, %v1198
      %v1202 = vld [vmem:[%s10] sm:$0x1]
      %v1203 = vld [vmem:[%s11] sm:$0x1]
      %v1204 = vsel %vm649, %v1200, 0.0
      %1205 = vadd.xlane.f32.xlu0 %v1204
      %v1206 = vpop.xlane.xlu0 %1205
      %v1207 = vsel %vm649, %v1201, 0.0
      %1208 = vadd.xlane.f32.xlu0 %v1207
      %v1209 = vpop.xlane.xlu0 %1208
      %v1210 = vmul.f32 %v1206, %v662
      %v1211 = vmul.f32 %v1209, %v662
      %v1212 = vsub.f32 %v1200, %v1210
      %v1213 = vsub.f32 %v1201, %v1211
      %v1214 = vmul.f32 %v1212, %v1212
      %v1215 = vmul.f32 %v1213, %v1213
      %v1216 = vsel %vm649, %v1214, 0.0
      %1217 = vadd.xlane.f32.xlu0 %v1216
      %v1218 = vpop.xlane.xlu0 %1217
      %v1219 = vsel %vm649, %v1215, 0.0
      %1220 = vadd.xlane.f32.xlu0 %v1219
      %v1221 = vpop.xlane.xlu0 %1220
      %v1222 = vmul.f32 %v1218, %v662
      %v1223 = vmul.f32 %v1221, %v662
      %v1224 = vadd.f32 %v1222, 1e-05
      %v1225 = vadd.f32 %v1223, 1e-05
      %v1226 = vrsqrt.pop %v1224
      %v1227 = vmul.f32 %v1226, %v1224
      %v1228 = vmul.f32 %v1227, %v1226
      %v1229 = vmul.f32 0.5, %v1228
      %v1230 = vsub.f32 1.5, %v1229
      %v1231 = vmul.f32 %v1226, %v1230
      %vm1232 = vweird.f32 %v1224
      %vm1233 = vweird.f32 %v1226
      %vm1234 = vmor %vm1232, %vm1233
      %v1235 = vsel %vm1234, %v1226, %v1231
      %v1236 = vrsqrt.pop %v1225
      %v1237 = vmul.f32 %v1236, %v1225
      %v1238 = vmul.f32 %v1237, %v1236
      %v1239 = vmul.f32 0.5, %v1238
      %v1240 = vsub.f32 1.5, %v1239
      %v1241 = vmul.f32 %v1236, %v1240
      %vm1242 = vweird.f32 %v1225
      %vm1243 = vweird.f32 %v1236
      %vm1244 = vmor %vm1242, %vm1243
      %v1245 = vsel %vm1244, %v1236, %v1241
      %v1246 = vmul.f32 %v1212, %v1235
      %v1247 = vmul.f32 %v1213, %v1245
      %v1249 = vperm.slane %v1202, 0
      %v1251 = vmul.f32 %v1246, %v1249
      %v1252 = vmul.f32 %v1247, %v1249
      %v1254 = vperm.slane %v1203, 0
      %v1256 = vadd.f32 %v1251, %v1254
      %v1257 = vadd.f32 %v1252, %v1254
      %v1258 = vld [vmem:[%s12] sm:$0xff]
      %v1259 = vld [vmem:[%s12 + $0x8] sm:$0xff]
      %v1260 = vld [vmem:[%s12 + $0x10] sm:$0xff]
      %v1261 = vld [vmem:[%s12 + $0x18] sm:$0xff]
      %v1262 = vld [vmem:[%s13] sm:$0x1]
      %v1264 = vperm.slane %v1262, 0
      %v1267 = vsel %vm649, %v1256, 0
      %v1270 = vsel %vm649, %v1257, 0
      %1272 = vmatpush.msra.mxu0 0.0
      %1273 = vmatpush.msra.mxu0 0.0
      %1274 = vmatpush.msra.mxu0 0.0
      %1275 = vmatpush.msra.mxu0 0.0
      %1276 = vmatpush.msra.mxu0 0.0
      %1277 = vmatpush.msra.mxu0 0.0
      %1278 = vmatpush.msra.mxu0 0.0
      %1279 = vmatpush.msra.mxu0 0.0
      %1280 = vmatpush.msra.mxu0 0.0
      %1281 = vmatpush.msra.mxu0 0.0
      %1282 = vmatpush.msra.mxu0 0.0
      %1283 = vmatpush.msra.mxu0 0.0
      %1284 = vmatpush.msra.mxu0 %v1261
      %1285 = vmatpush.msra.mxu0 %v1260
      %1286 = vmatpush.msra.mxu0 %v1259
      %1287 = vmatpush.msra.mxu0 %v1258
      %1288 = vmatmul.f32.gmra.mxu0 %v1267
      %v1289 = vpop.f32.mrf.mxu0
      %v1290 = vadd.f32 %v1264, %v1289
      %1291 = vmatmul.f32.gmra.mxu0 %v1270
      %v1292 = vpop.f32.mrf.mxu0
      %v1293 = vadd.f32 %v1264, %v1292
      %1294 = vdwg.mxu0
      %v1295 = vmul.f32 %v1290, 0.5
      %v1296 = vmul.f32 %v1293, 0.5
      %v1297 = vmul.f32 %v1290, 0.044715
      %v1298 = vmul.f32 %v1293, 0.044715
      %v1299 = vmul.f32 %v1297, %v1290
      %v1300 = vmul.f32 %v1298, %v1293
      %v1301 = vmul.f32 %v1299, %v1290
      %v1302 = vmul.f32 %v1300, %v1293
      %v1303 = vadd.f32 %v1290, %v1301
      %v1304 = vadd.f32 %v1293, %v1302
      %v1305 = vmul.f32 %v1303, 0.7978846
      %v1306 = vmul.f32 %v1304, 0.7978846
      %v1307 = vtanh.pop %v1305
      %v1308 = vtanh.pop %v1306
      %v1309 = vadd.f32 %v1307, 1.0
      %v1310 = vadd.f32 %v1308, 1.0
      %v1311 = vmul.f32 %v1295, %v1309
      %v1312 = vmul.f32 %v1296, %v1310
      %v1313 = vld [vmem:[%s14] sm:$0xff]
      %v1314 = vld [vmem:[%s14 + $0x8] sm:$0xff]
      %v1315 = vld [vmem:[%s14 + $0x10] sm:$0xff]
      %v1316 = vld [vmem:[%s14 + $0x18] sm:$0xff]
      %v1317 = vld [vmem:[%s14 + $0x20] sm:$0xff]
      %v1318 = vld [vmem:[%s14 + $0x28] sm:$0xff]
      %v1319 = vld [vmem:[%s14 + $0x30] sm:$0xff]
      %v1320 = vld [vmem:[%s14 + $0x38] sm:$0xff]
      %v1321 = vld [vmem:[%s15] sm:$0x1]
      %v1323 = vperm.slane %v1321, 0
      %vm1325 = vcmask 523264
      %v1327 = vsel %vm1325, %v1311, 0
      %v1330 = vsel %vm1325, %v1312, 0
      %1332 = vmatpush.msra.mxu0 0.0
      %1333 = vmatpush.msra.mxu0 0.0
      %1334 = vmatpush.msra.mxu0 0.0
      %1335 = vmatpush.msra.mxu0 0.0
      %1336 = vmatpush.msra.mxu0 0.0
      %1337 = vmatpush.msra.mxu0 0.0
      %1338 = vmatpush.msra.mxu0 0.0
      %1339 = vmatpush.msra.mxu0 0.0
      %1340 = vmatpush.msra.mxu0 %v1320
      %1341 = vmatpush.msra.mxu0 %v1319
      %1342 = vmatpush.msra.mxu0 %v1318
      %1343 = vmatpush.msra.mxu0 %v1317
      %1344 = vmatpush.msra.mxu0 %v1316
      %1345 = vmatpush.msra.mxu0 %v1315
      %1346 = vmatpush.msra.mxu0 %v1314
      %1347 = vmatpush.msra.mxu0 %v1313
      %1348 = vmatmul.f32.gmra.mxu0 %v1327
      %v1349 = vpop.f32.mrf.mxu0
      %v1350 = vadd.f32 %v1323, %v1349
      %1351 = vmatmul.f32.gmra.mxu0 %v1330
      %v1352 = vpop.f32.mrf.mxu0
      %v1353 = vadd.f32 %v1323, %v1352
      %1354 = vdwg.mxu0
      %v1355 = vadd.f32 %v1200, %v1350
      %v1356 = vadd.f32 %v1201, %v1353
      %s1357 = scalar_lea.vmem %s4, 1
      %v1358 = vld [vmem:[%s1357] sm:$0x1]
      %s1359 = scalar_lea.vmem %s5, 1
      %v1360 = vld [vmem:[%s1359] sm:$0x1]
      %v1361 = vsel %vm649, %v1355, 0.0
      %1362 = vadd.xlane.f32.xlu0 %v1361
      %v1363 = vpop.xlane.xlu0 %1362
      %v1364 = vsel %vm649, %v1356, 0.0
      %1365 = vadd.xlane.f32.xlu0 %v1364
      %v1366 = vpop.xlane.xlu0 %1365
      %v1367 = vmul.f32 %v1363, %v662
      %v1368 = vmul.f32 %v1366, %v662
      %v1369 = vsub.f32 %v1355, %v1367
      %v1370 = vsub.f32 %v1356, %v1368
      %v1371 = vmul.f32 %v1369, %v1369
      %v1372 = vmul.f32 %v1370, %v1370
      %v1373 = vsel %vm649, %v1371, 0.0
      %1374 = vadd.xlane.f32.xlu0 %v1373
      %v1375 = vpop.xlane.xlu0 %1374
      %v1376 = vsel %vm649, %v1372, 0.0
      %1377 = vadd.xlane.f32.xlu0 %v1376
      %v1378 = vpop.xlane.xlu0 %1377
      %v1379 = vmul.f32 %v1375, %v662
      %v1380 = vmul.f32 %v1378, %v662
      %v1381 = vadd.f32 %v1379, 1e-05
      %v1382 = vadd.f32 %v1380, 1e-05
      %v1383 = vrsqrt.pop %v1381
      %v1384 = vmul.f32 %v1383, %v1381
      %v1385 = vmul.f32 %v1384, %v1383
      %v1386 = vmul.f32 0.5, %v1385
      %v1387 = vsub.f32 1.5, %v1386
      %v1388 = vmul.f32 %v1383, %v1387
      %vm1389 = vweird.f32 %v1381
      %vm1390 = vweird.f32 %v1383
      %vm1391 = vmor %vm1389, %vm1390
      %v1392 = vsel %vm1391, %v1383, %v1388
      %v1393 = vrsqrt.pop %v1382
      %v1394 = vmul.f32 %v1393, %v1382
      %v1395 = vmul.f32 %v1394, %v1393
      %v1396 = vmul.f32 0.5, %v1395
      %v1397 = vsub.f32 1.5, %v1396
      %v1398 = vmul.f32 %v1393, %v1397
      %vm1399 = vweird.f32 %v1382
      %vm1400 = vweird.f32 %v1393
      %vm1401 = vmor %vm1399, %vm1400
      %v1402 = vsel %vm1401, %v1393, %v1398
      %v1403 = vmul.f32 %v1369, %v1392
      %v1404 = vmul.f32 %v1370, %v1402
      %v1406 = vperm.slane %v1358, 0
      %v1408 = vmul.f32 %v1403, %v1406
      %v1409 = vmul.f32 %v1404, %v1406
      %v1411 = vperm.slane %v1360, 0
      %v1413 = vadd.f32 %v1408, %v1411
      %v1414 = vadd.f32 %v1409, %v1411
      %s1415 = scalar_lea.vmem %s6, 32
      %v1416 = vld [vmem:[%s1415] sm:$0xff]
      %v1417 = vld [vmem:[%s1415 + $0x8] sm:$0xff]
      %v1418 = vld [vmem:[%s1415 + $0x10] sm:$0xff]
      %v1419 = vld [vmem:[%s1415 + $0x18] sm:$0xff]
      %s1420 = scalar_lea.vmem %s7, 1
      %v1421 = vld [vmem:[%s1420] sm:$0x1]
      %v1423 = vperm.slane %v1421, 0
      %v1426 = vsel %vm649, %v1413, 0
      %v1429 = vsel %vm649, %v1414, 0
      %1431 = vmatpush.msra.mxu0 0.0
      %1432 = vmatpush.msra.mxu0 0.0
      %1433 = vmatpush.msra.mxu0 0.0
      %1434 = vmatpush.msra.mxu0 0.0
      %1435 = vmatpush.msra.mxu0 0.0
      %1436 = vmatpush.msra.mxu0 0.0
      %1437 = vmatpush.msra.mxu0 0.0
      %1438 = vmatpush.msra.mxu0 0.0
      %1439 = vmatpush.msra.mxu0 0.0
      %1440 = vmatpush.msra.mxu0 0.0
      %1441 = vmatpush.msra.mxu0 0.0
      %1442 = vmatpush.msra.mxu0 0.0
      %1443 = vmatpush.msra.mxu0 %v1419
      %1444 = vmatpush.msra.mxu0 %v1418
      %1445 = vmatpush.msra.mxu0 %v1417
      %1446 = vmatpush.msra.mxu0 %v1416
      %1447 = vmatmul.f32.gmra.mxu0 %v1426
      %v1448 = vpop.f32.mrf.mxu0
      %v1449 = vadd.f32 %v1423, %v1448
      %1450 = vmatmul.f32.gmra.mxu0 %v1429
      %v1451 = vpop.f32.mrf.mxu0
      %v1452 = vadd.f32 %v1423, %v1451
      %1453 = vdwg.mxu0
      %1456 = vrot.lane.b32.xlu0 %v1449, 96
      %v1457 = vpop.permute.xlu0 %1456
      %1458 = vrot.lane.b32.xlu0 %v1452, 96
      %v1459 = vpop.permute.xlu0 %1458
      %v1460 = vsel %vm754, %v1449, 0
      %v1462 = vsel %vm754, %v1452, 0
      %v1464 = vsel %vm754, %v1457, 0
      %v1466 = vsel %vm754, %v1459, 0
      %1468 = vmatpush.xpose.msra.mxu0 0.0
      %1469 = vmatpush.xpose.msra.mxu0 0.0
      %1470 = vmatpush.xpose.msra.mxu0 0.0
      %1471 = vmatpush.xpose.msra.mxu0 0.0
      %1472 = vmatpush.xpose.msra.mxu0 0.0
      %1473 = vmatpush.xpose.msra.mxu0 0.0
      %1474 = vmatpush.xpose.msra.mxu0 0.0
      %1475 = vmatpush.xpose.msra.mxu0 0.0
      %1476 = vmatpush.xpose.msra.mxu0 0.0
      %1477 = vmatpush.xpose.msra.mxu0 0.0
      %1478 = vmatpush.xpose.msra.mxu0 0.0
      %1479 = vmatpush.xpose.msra.mxu0 0.0
      %1480 = vmatpush.xpose.msra.mxu0 0.0
      %1481 = vmatpush.xpose.msra.mxu0 0.0
      %1482 = vmatpush.xpose.msra.mxu0 %v1466
      %1483 = vmatpush.xpose.msra.mxu0 %v1464
      %1484 = vmatmul.f32.gmra.mxu0 %v1460
      %v1485 = vpop.f32.mrf.mxu0
      %v1486 = vadd.f32 0.0, %v1485
      %1487 = vmatmul.f32.gmra.mxu0 %v1462
      %v1488 = vpop.f32.mrf.mxu0
      %v1489 = vadd.f32 0.0, %v1488
      %1490 = vdwg.mxu0
      %v1491 = vsel %vm786, %v1486, -inf
      %1492 = vmax.xlane.f32.xlu0 %v1491
      %v1493 = vpop.xlane.xlu0 %1492
      %v1494 = vsel %vm786, %v1489, -inf
      %1495 = vmax.xlane.f32.xlu0 %v1494
      %v1496 = vpop.xlane.xlu0 %1495
      %v1497 = vsub.f32 %v1486, %v1493
      %v1498 = vsub.f32 %v1489, %v1496
      %v1499 = vmul.f32 %v1497, 1.442695
      %v1500 = vpow.pop %v1499
      %v1501 = vmul.f32 %v1498, 1.442695
      %v1502 = vpow.pop %v1501
      %v1503 = vsel %vm786, %v1500, 0.0
      %1504 = vadd.xlane.f32.xlu0 %v1503
      %v1505 = vpop.xlane.xlu0 %1504
      %v1506 = vsel %vm786, %v1502, 0.0
      %1507 = vadd.xlane.f32.xlu0 %v1506
      %v1508 = vpop.xlane.xlu0 %1507
      %v1509 = vrcp.pop %v1505
      %v1510 = vrcp.pop %v1508
      %v1511 = vmul.f32 %v1500, %v1509
      %v1512 = vmul.f32 %v1502, %v1510
      %1513 = vrot.lane.b32.xlu0 %v1449, 64
      %v1514 = vpop.permute.xlu0 %1513
      %1515 = vrot.lane.b32.xlu0 %v1452, 64
      %v1516 = vpop.permute.xlu0 %1515
      %v1520 = vsel %vm786, %v1511, 0
      %v1523 = vsel %vm786, %v1512, 0
      %1525 = vmatpush.msra.mxu0 0.0
      %1526 = vmatpush.msra.mxu0 0.0
      %1527 = vmatpush.msra.mxu0 0.0
      %1528 = vmatpush.msra.mxu0 0.0
      %1529 = vmatpush.msra.mxu0 0.0
      %1530 = vmatpush.msra.mxu0 0.0
      %1531 = vmatpush.msra.mxu0 0.0
      %1532 = vmatpush.msra.mxu0 0.0
      %1533 = vmatpush.msra.mxu0 0.0
      %1534 = vmatpush.msra.mxu0 0.0
      %1535 = vmatpush.msra.mxu0 0.0
      %1536 = vmatpush.msra.mxu0 0.0
      %1537 = vmatpush.msra.mxu0 0.0
      %1538 = vmatpush.msra.mxu0 0.0
      %1539 = vmatpush.msra.mxu0 %v1516
      %1540 = vmatpush.msra.mxu0 %v1514
      %1541 = vmatmul.f32.gmra.mxu0 %v1520
      %v1542 = vpop.f32.mrf.mxu0
      %v1543 = vadd.f32 0.0, %v1542
      %1544 = vmatmul.f32.gmra.mxu0 %v1523
      %v1545 = vpop.f32.mrf.mxu0
      %v1546 = vadd.f32 0.0, %v1545
      %1547 = vdwg.mxu0
      %1548 = vrot.lane.b32.xlu0 %v1449, 120
      %v1549 = vpop.permute.xlu0 %1548
      %1550 = vrot.lane.b32.xlu0 %v1452, 120
      %v1551 = vpop.permute.xlu0 %1550
      %1552 = vrot.lane.b32.xlu0 %v1449, 88
      %v1553 = vpop.permute.xlu0 %1552
      %1554 = vrot.lane.b32.xlu0 %v1452, 88
      %v1555 = vpop.permute.xlu0 %1554
      %v1556 = vsel %vm754, %v1549, 0
      %v1558 = vsel %vm754, %v1551, 0
      %v1560 = vsel %vm754, %v1553, 0
      %v1562 = vsel %vm754, %v1555, 0
      %1564 = vmatpush.xpose.msra.mxu0 0.0
      %1565 = vmatpush.xpose.msra.mxu0 0.0
      %1566 = vmatpush.xpose.msra.mxu0 0.0
      %1567 = vmatpush.xpose.msra.mxu0 0.0
      %1568 = vmatpush.xpose.msra.mxu0 0.0
      %1569 = vmatpush.xpose.msra.mxu0 0.0
      %1570 = vmatpush.xpose.msra.mxu0 0.0
      %1571 = vmatpush.xpose.msra.mxu0 0.0
      %1572 = vmatpush.xpose.msra.mxu0 0.0
      %1573 = vmatpush.xpose.msra.mxu0 0.0
      %1574 = vmatpush.xpose.msra.mxu0 0.0
      %1575 = vmatpush.xpose.msra.mxu0 0.0
      %1576 = vmatpush.xpose.msra.mxu0 0.0
      %1577 = vmatpush.xpose.msra.mxu0 0.0
      %1578 = vmatpush.xpose.msra.mxu0 %v1562
      %1579 = vmatpush.xpose.msra.mxu0 %v1560
      %1580 = vmatmul.f32.gmra.mxu0 %v1556
      %v1581 = vpop.f32.mrf.mxu0
      %v1582 = vadd.f32 0.0, %v1581
      %1583 = vmatmul.f32.gmra.mxu0 %v1558
      %v1584 = vpop.f32.mrf.mxu0
      %v1585 = vadd.f32 0.0, %v1584
      %1586 = vdwg.mxu0
      %v1587 = vsel %vm786, %v1582, -inf
      %1588 = vmax.xlane.f32.xlu0 %v1587
      %v1589 = vpop.xlane.xlu0 %1588
      %v1590 = vsel %vm786, %v1585, -inf
      %1591 = vmax.xlane.f32.xlu0 %v1590
      %v1592 = vpop.xlane.xlu0 %1591
      %v1593 = vsub.f32 %v1582, %v1589
      %v1594 = vsub.f32 %v1585, %v1592
      %v1595 = vmul.f32 %v1593, 1.442695
      %v1596 = vpow.pop %v1595
      %v1597 = vmul.f32 %v1594, 1.442695
      %v1598 = vpow.pop %v1597
      %v1599 = vsel %vm786, %v1596, 0.0
      %1600 = vadd.xlane.f32.xlu0 %v1599
      %v1601 = vpop.xlane.xlu0 %1600
      %v1602 = vsel %vm786, %v1598, 0.0
      %1603 = vadd.xlane.f32.xlu0 %v1602
      %v1604 = vpop.xlane.xlu0 %1603
      %v1605 = vrcp.pop %v1601
      %v1606 = vrcp.pop %v1604
      %v1607 = vmul.f32 %v1596, %v1605
      %v1608 = vmul.f32 %v1598, %v1606
      %1609 = vrot.lane.b32.xlu0 %v1449, 56
      %v1610 = vpop.permute.xlu0 %1609
      %1611 = vrot.lane.b32.xlu0 %v1452, 56
      %v1612 = vpop.permute.xlu0 %1611
      %v1616 = vsel %vm786, %v1607, 0
      %v1619 = vsel %vm786, %v1608, 0
      %1621 = vmatpush.msra.mxu0 0.0
      %1622 = vmatpush.msra.mxu0 0.0
      %1623 = vmatpush.msra.mxu0 0.0
      %1624 = vmatpush.msra.mxu0 0.0
      %1625 = vmatpush.msra.mxu0 0.0
      %1626 = vmatpush.msra.mxu0 0.0
      %1627 = vmatpush.msra.mxu0 0.0
      %1628 = vmatpush.msra.mxu0 0.0
      %1629 = vmatpush.msra.mxu0 0.0
      %1630 = vmatpush.msra.mxu0 0.0
      %1631 = vmatpush.msra.mxu0 0.0
      %1632 = vmatpush.msra.mxu0 0.0
      %1633 = vmatpush.msra.mxu0 0.0
      %1634 = vmatpush.msra.mxu0 0.0
      %1635 = vmatpush.msra.mxu0 %v1612
      %1636 = vmatpush.msra.mxu0 %v1610
      %1637 = vmatmul.f32.gmra.mxu0 %v1616
      %v1638 = vpop.f32.mrf.mxu0
      %v1639 = vadd.f32 0.0, %v1638
      %1640 = vmatmul.f32.gmra.mxu0 %v1619
      %v1641 = vpop.f32.mrf.mxu0
      %v1642 = vadd.f32 0.0, %v1641
      %1643 = vdwg.mxu0
      %1644 = vrot.lane.b32.xlu0 %v1449, 112
      %v1645 = vpop.permute.xlu0 %1644
      %1646 = vrot.lane.b32.xlu0 %v1452, 112
      %v1647 = vpop.permute.xlu0 %1646
      %1648 = vrot.lane.b32.xlu0 %v1449, 80
      %v1649 = vpop.permute.xlu0 %1648
      %1650 = vrot.lane.b32.xlu0 %v1452, 80
      %v1651 = vpop.permute.xlu0 %1650
      %v1652 = vsel %vm754, %v1645, 0
      %v1654 = vsel %vm754, %v1647, 0
      %v1656 = vsel %vm754, %v1649, 0
      %v1658 = vsel %vm754, %v1651, 0
      %1660 = vmatpush.xpose.msra.mxu0 0.0
      %1661 = vmatpush.xpose.msra.mxu0 0.0
      %1662 = vmatpush.xpose.msra.mxu0 0.0
      %1663 = vmatpush.xpose.msra.mxu0 0.0
      %1664 = vmatpush.xpose.msra.mxu0 0.0
      %1665 = vmatpush.xpose.msra.mxu0 0.0
      %1666 = vmatpush.xpose.msra.mxu0 0.0
      %1667 = vmatpush.xpose.msra.mxu0 0.0
      %1668 = vmatpush.xpose.msra.mxu0 0.0
      %1669 = vmatpush.xpose.msra.mxu0 0.0
      %1670 = vmatpush.xpose.msra.mxu0 0.0
      %1671 = vmatpush.xpose.msra.mxu0 0.0
      %1672 = vmatpush.xpose.msra.mxu0 0.0
      %1673 = vmatpush.xpose.msra.mxu0 0.0
      %1674 = vmatpush.xpose.msra.mxu0 %v1658
      %1675 = vmatpush.xpose.msra.mxu0 %v1656
      %1676 = vmatmul.f32.gmra.mxu0 %v1652
      %v1677 = vpop.f32.mrf.mxu0
      %v1678 = vadd.f32 0.0, %v1677
      %1679 = vmatmul.f32.gmra.mxu0 %v1654
      %v1680 = vpop.f32.mrf.mxu0
      %v1681 = vadd.f32 0.0, %v1680
      %1682 = vdwg.mxu0
      %v1683 = vsel %vm786, %v1678, -inf
      %1684 = vmax.xlane.f32.xlu0 %v1683
      %v1685 = vpop.xlane.xlu0 %1684
      %v1686 = vsel %vm786, %v1681, -inf
      %1687 = vmax.xlane.f32.xlu0 %v1686
      %v1688 = vpop.xlane.xlu0 %1687
      %v1689 = vsub.f32 %v1678, %v1685
      %v1690 = vsub.f32 %v1681, %v1688
      %v1691 = vmul.f32 %v1689, 1.442695
      %v1692 = vpow.pop %v1691
      %v1693 = vmul.f32 %v1690, 1.442695
      %v1694 = vpow.pop %v1693
      %v1695 = vsel %vm786, %v1692, 0.0
      %1696 = vadd.xlane.f32.xlu0 %v1695
      %v1697 = vpop.xlane.xlu0 %1696
      %v1698 = vsel %vm786, %v1694, 0.0
      %1699 = vadd.xlane.f32.xlu0 %v1698
      %v1700 = vpop.xlane.xlu0 %1699
      %v1701 = vrcp.pop %v1697
      %v1702 = vrcp.pop %v1700
      %v1703 = vmul.f32 %v1692, %v1701
      %v1704 = vmul.f32 %v1694, %v1702
      %1705 = vrot.lane.b32.xlu0 %v1449, 48
      %v1706 = vpop.permute.xlu0 %1705
      %1707 = vrot.lane.b32.xlu0 %v1452, 48
      %v1708 = vpop.permute.xlu0 %1707
      %v1712 = vsel %vm786, %v1703, 0
      %v1715 = vsel %vm786, %v1704, 0
      %1717 = vmatpush.msra.mxu0 0.0
      %1718 = vmatpush.msra.mxu0 0.0
      %1719 = vmatpush.msra.mxu0 0.0
      %1720 = vmatpush.msra.mxu0 0.0
      %1721 = vmatpush.msra.mxu0 0.0
      %1722 = vmatpush.msra.mxu0 0.0
      %1723 = vmatpush.msra.mxu0 0.0
      %1724 = vmatpush.msra.mxu0 0.0
      %1725 = vmatpush.msra.mxu0 0.0
      %1726 = vmatpush.msra.mxu0 0.0
      %1727 = vmatpush.msra.mxu0 0.0
      %1728 = vmatpush.msra.mxu0 0.0
      %1729 = vmatpush.msra.mxu0 0.0
      %1730 = vmatpush.msra.mxu0 0.0
      %1731 = vmatpush.msra.mxu0 %v1708
      %1732 = vmatpush.msra.mxu0 %v1706
      %1733 = vmatmul.f32.gmra.mxu0 %v1712
      %v1734 = vpop.f32.mrf.mxu0
      %v1735 = vadd.f32 0.0, %v1734
      %1736 = vmatmul.f32.gmra.mxu0 %v1715
      %v1737 = vpop.f32.mrf.mxu0
      %v1738 = vadd.f32 0.0, %v1737
      %1739 = vdwg.mxu0
      %1740 = vrot.lane.b32.xlu0 %v1449, 104
      %v1741 = vpop.permute.xlu0 %1740
      %1742 = vrot.lane.b32.xlu0 %v1452, 104
      %v1743 = vpop.permute.xlu0 %1742
      %1744 = vrot.lane.b32.xlu0 %v1449, 72
      %v1745 = vpop.permute.xlu0 %1744
      %1746 = vrot.lane.b32.xlu0 %v1452, 72
      %v1747 = vpop.permute.xlu0 %1746
      %v1748 = vsel %vm754, %v1741, 0
      %v1750 = vsel %vm754, %v1743, 0
      %v1752 = vsel %vm754, %v1745, 0
      %v1754 = vsel %vm754, %v1747, 0
      %1756 = vmatpush.xpose.msra.mxu0 0.0
      %1757 = vmatpush.xpose.msra.mxu0 0.0
      %1758 = vmatpush.xpose.msra.mxu0 0.0
      %1759 = vmatpush.xpose.msra.mxu0 0.0
      %1760 = vmatpush.xpose.msra.mxu0 0.0
      %1761 = vmatpush.xpose.msra.mxu0 0.0
      %1762 = vmatpush.xpose.msra.mxu0 0.0
      %1763 = vmatpush.xpose.msra.mxu0 0.0
      %1764 = vmatpush.xpose.msra.mxu0 0.0
      %1765 = vmatpush.xpose.msra.mxu0 0.0
      %1766 = vmatpush.xpose.msra.mxu0 0.0
      %1767 = vmatpush.xpose.msra.mxu0 0.0
      %1768 = vmatpush.xpose.msra.mxu0 0.0
      %1769 = vmatpush.xpose.msra.mxu0 0.0
      %1770 = vmatpush.xpose.msra.mxu0 %v1754
      %1771 = vmatpush.xpose.msra.mxu0 %v1752
      %1772 = vmatmul.f32.gmra.mxu0 %v1748
      %v1773 = vpop.f32.mrf.mxu0
      %v1774 = vadd.f32 0.0, %v1773
      %1775 = vmatmul.f32.gmra.mxu0 %v1750
      %v1776 = vpop.f32.mrf.mxu0
      %v1777 = vadd.f32 0.0, %v1776
      %1778 = vdwg.mxu0
      %v1779 = vsel %vm786, %v1774, -inf
      %1780 = vmax.xlane.f32.xlu0 %v1779
      %v1781 = vpop.xlane.xlu0 %1780
      %v1782 = vsel %vm786, %v1777, -inf
      %1783 = vmax.xlane.f32.xlu0 %v1782
      %v1784 = vpop.xlane.xlu0 %1783
      %v1785 = vsub.f32 %v1774, %v1781
      %v1786 = vsub.f32 %v1777, %v1784
      %v1787 = vmul.f32 %v1785, 1.442695
      %v1788 = vpow.pop %v1787
      %v1789 = vmul.f32 %v1786, 1.442695
      %v1790 = vpow.pop %v1789
      %v1791 = vsel %vm786, %v1788, 0.0
      %1792 = vadd.xlane.f32.xlu0 %v1791
      %v1793 = vpop.xlane.xlu0 %1792
      %v1794 = vsel %vm786, %v1790, 0.0
      %1795 = vadd.xlane.f32.xlu0 %v1794
      %v1796 = vpop.xlane.xlu0 %1795
      %v1797 = vrcp.pop %v1793
      %v1798 = vrcp.pop %v1796
      %v1799 = vmul.f32 %v1788, %v1797
      %v1800 = vmul.f32 %v1790, %v1798
      %1801 = vrot.lane.b32.xlu0 %v1449, 40
      %v1802 = vpop.permute.xlu0 %1801
      %1803 = vrot.lane.b32.xlu0 %v1452, 40
      %v1804 = vpop.permute.xlu0 %1803
      %v1808 = vsel %vm786, %v1799, 0
      %v1811 = vsel %vm786, %v1800, 0
      %1813 = vmatpush.msra.mxu0 0.0
      %1814 = vmatpush.msra.mxu0 0.0
      %1815 = vmatpush.msra.mxu0 0.0
      %1816 = vmatpush.msra.mxu0 0.0
      %1817 = vmatpush.msra.mxu0 0.0
      %1818 = vmatpush.msra.mxu0 0.0
      %1819 = vmatpush.msra.mxu0 0.0
      %1820 = vmatpush.msra.mxu0 0.0
      %1821 = vmatpush.msra.mxu0 0.0
      %1822 = vmatpush.msra.mxu0 0.0
      %1823 = vmatpush.msra.mxu0 0.0
      %1824 = vmatpush.msra.mxu0 0.0
      %1825 = vmatpush.msra.mxu0 0.0
      %1826 = vmatpush.msra.mxu0 0.0
      %1827 = vmatpush.msra.mxu0 %v1804
      %1828 = vmatpush.msra.mxu0 %v1802
      %1829 = vmatmul.f32.gmra.mxu0 %v1808
      %v1830 = vpop.f32.mrf.mxu0
      %v1831 = vadd.f32 0.0, %v1830
      %1832 = vmatmul.f32.gmra.mxu0 %v1811
      %v1833 = vpop.f32.mrf.mxu0
      %v1834 = vadd.f32 0.0, %v1833
      %1835 = vdwg.mxu0
      %1838 = vrot.lane.b32.xlu0 %v1639, 8
      %v1839 = vpop.permute.xlu0 %1838
      %1840 = vrot.lane.b32.xlu0 %v1642, 8
      %v1841 = vpop.permute.xlu0 %1840
      %1846 = vrot.lane.b32.xlu0 %v1735, 16
      %v1847 = vpop.permute.xlu0 %1846
      %1848 = vrot.lane.b32.xlu0 %v1738, 16
      %v1849 = vpop.permute.xlu0 %1848
      %1854 = vrot.lane.b32.xlu0 %v1831, 24
      %v1855 = vpop.permute.xlu0 %1854
      %1856 = vrot.lane.b32.xlu0 %v1834, 24
      %v1857 = vpop.permute.xlu0 %1856
      %v1860 = vsel %vm754, %v1543, %v1839
      %v1861 = vsel %vm754, %v1546, %v1841
      %v1862 = vsel %vm786, %v1860, %v1847
      %v1863 = vsel %vm786, %v1861, %v1849
      %v1864 = vsel %vm1160, %v1862, %v1855
      %v1865 = vsel %vm1160, %v1863, %v1857
      %s1866 = scalar_lea.vmem %s8, 32
      %v1867 = vld [vmem:[%s1866] sm:$0xff]
      %v1868 = vld [vmem:[%s1866 + $0x8] sm:$0xff]
      %v1869 = vld [vmem:[%s1866 + $0x10] sm:$0xff]
      %v1870 = vld [vmem:[%s1866 + $0x18] sm:$0xff]
      %s1871 = scalar_lea.vmem %s9, 1
      %v1872 = vld [vmem:[%s1871] sm:$0x1]
      %v1874 = vperm.slane %v1872, 0
      %v1877 = vsel %vm649, %v1864, 0
      %v1880 = vsel %vm649, %v1865, 0
      %1882 = vmatpush.msra.mxu0 0.0
      %1883 = vmatpush.msra.mxu0 0.0
      %1884 = vmatpush.msra.mxu0 0.0
      %1885 = vmatpush.msra.mxu0 0.0
      %1886 = vmatpush.msra.mxu0 0.0
      %1887 = vmatpush.msra.mxu0 0.0
      %1888 = vmatpush.msra.mxu0 0.0
      %1889 = vmatpush.msra.mxu0 0.0
      %1890 = vmatpush.msra.mxu0 0.0
      %1891 = vmatpush.msra.mxu0 0.0
      %1892 = vmatpush.msra.mxu0 0.0
      %1893 = vmatpush.msra.mxu0 0.0
      %1894 = vmatpush.msra.mxu0 %v1870
      %1895 = vmatpush.msra.mxu0 %v1869
      %1896 = vmatpush.msra.mxu0 %v1868
      %1897 = vmatpush.msra.mxu0 %v1867
      %1898 = vmatmul.f32.gmra.mxu0 %v1877
      %v1899 = vpop.f32.mrf.mxu0
      %v1900 = vadd.f32 %v1874, %v1899
      %1901 = vmatmul.f32.gmra.mxu0 %v1880
      %v1902 = vpop.f32.mrf.mxu0
      %v1903 = vadd.f32 %v1874, %v1902
      %1904 = vdwg.mxu0
      %v1905 = vadd.f32 %v1355, %v1900
      %v1906 = vadd.f32 %v1356, %v1903
      %s1907 = scalar_lea.vmem %s10, 1
      %v1908 = vld [vmem:[%s1907] sm:$0x1]
      %s1909 = scalar_lea.vmem %s11, 1
      %v1910 = vld [vmem:[%s1909] sm:$0x1]
      %v1911 = vsel %vm649, %v1905, 0.0
      %1912 = vadd.xlane.f32.xlu0 %v1911
      %v1913 = vpop.xlane.xlu0 %1912
      %v1914 = vsel %vm649, %v1906, 0.0
      %1915 = vadd.xlane.f32.xlu0 %v1914
      %v1916 = vpop.xlane.xlu0 %1915
      %v1917 = vmul.f32 %v1913, %v662
      %v1918 = vmul.f32 %v1916, %v662
      %v1919 = vsub.f32 %v1905, %v1917
      %v1920 = vsub.f32 %v1906, %v1918
      %v1921 = vmul.f32 %v1919, %v1919
      %v1922 = vmul.f32 %v1920, %v1920
      %v1923 = vsel %vm649, %v1921, 0.0
      %1924 = vadd.xlane.f32.xlu0 %v1923
      %v1925 = vpop.xlane.xlu0 %1924
      %v1926 = vsel %vm649, %v1922, 0.0
      %1927 = vadd.xlane.f32.xlu0 %v1926
      %v1928 = vpop.xlane.xlu0 %1927
      %v1929 = vmul.f32 %v1925, %v662
      %v1930 = vmul.f32 %v1928, %v662
      %v1931 = vadd.f32 %v1929, 1e-05
      %v1932 = vadd.f32 %v1930, 1e-05
      %v1933 = vrsqrt.pop %v1931
      %v1934 = vmul.f32 %v1933, %v1931
      %v1935 = vmul.f32 %v1934, %v1933
      %v1936 = vmul.f32 0.5, %v1935
      %v1937 = vsub.f32 1.5, %v1936
      %v1938 = vmul.f32 %v1933, %v1937
      %vm1939 = vweird.f32 %v1931
      %vm1940 = vweird.f32 %v1933
      %vm1941 = vmor %vm1939, %vm1940
      %v1942 = vsel %vm1941, %v1933, %v1938
      %v1943 = vrsqrt.pop %v1932
      %v1944 = vmul.f32 %v1943, %v1932
      %v1945 = vmul.f32 %v1944, %v1943
      %v1946 = vmul.f32 0.5, %v1945
      %v1947 = vsub.f32 1.5, %v1946
      %v1948 = vmul.f32 %v1943, %v1947
      %vm1949 = vweird.f32 %v1932
      %vm1950 = vweird.f32 %v1943
      %vm1951 = vmor %vm1949, %vm1950
      %v1952 = vsel %vm1951, %v1943, %v1948
      %v1953 = vmul.f32 %v1919, %v1942
      %v1954 = vmul.f32 %v1920, %v1952
      %v1956 = vperm.slane %v1908, 0
      %v1958 = vmul.f32 %v1953, %v1956
      %v1959 = vmul.f32 %v1954, %v1956
      %v1961 = vperm.slane %v1910, 0
      %v1963 = vadd.f32 %v1958, %v1961
      %v1964 = vadd.f32 %v1959, %v1961
      %s1965 = scalar_lea.vmem %s12, 32
      %v1966 = vld [vmem:[%s1965] sm:$0xff]
      %v1967 = vld [vmem:[%s1965 + $0x8] sm:$0xff]
      %v1968 = vld [vmem:[%s1965 + $0x10] sm:$0xff]
      %v1969 = vld [vmem:[%s1965 + $0x18] sm:$0xff]
      %s1970 = scalar_lea.vmem %s13, 1
      %v1971 = vld [vmem:[%s1970] sm:$0x1]
      %v1973 = vperm.slane %v1971, 0
      %v1976 = vsel %vm649, %v1963, 0
      %v1979 = vsel %vm649, %v1964, 0
      %1981 = vmatpush.msra.mxu0 0.0
      %1982 = vmatpush.msra.mxu0 0.0
      %1983 = vmatpush.msra.mxu0 0.0
      %1984 = vmatpush.msra.mxu0 0.0
      %1985 = vmatpush.msra.mxu0 0.0
      %1986 = vmatpush.msra.mxu0 0.0
      %1987 = vmatpush.msra.mxu0 0.0
      %1988 = vmatpush.msra.mxu0 0.0
      %1989 = vmatpush.msra.mxu0 0.0
      %1990 = vmatpush.msra.mxu0 0.0
      %1991 = vmatpush.msra.mxu0 0.0
      %1992 = vmatpush.msra.mxu0 0.0
      %1993 = vmatpush.msra.mxu0 %v1969
      %1994 = vmatpush.msra.mxu0 %v1968
      %1995 = vmatpush.msra.mxu0 %v1967
      %1996 = vmatpush.msra.mxu0 %v1966
      %1997 = vmatmul.f32.gmra.mxu0 %v1976
      %v1998 = vpop.f32.mrf.mxu0
      %v1999 = vadd.f32 %v1973, %v1998
      %2000 = vmatmul.f32.gmra.mxu0 %v1979
      %v2001 = vpop.f32.mrf.mxu0
      %v2002 = vadd.f32 %v1973, %v2001
      %2003 = vdwg.mxu0
      %v2004 = vmul.f32 %v1999, 0.5
      %v2005 = vmul.f32 %v2002, 0.5
      %v2006 = vmul.f32 %v1999, 0.044715
      %v2007 = vmul.f32 %v2002, 0.044715
      %v2008 = vmul.f32 %v2006, %v1999
      %v2009 = vmul.f32 %v2007, %v2002
      %v2010 = vmul.f32 %v2008, %v1999
      %v2011 = vmul.f32 %v2009, %v2002
      %v2012 = vadd.f32 %v1999, %v2010
      %v2013 = vadd.f32 %v2002, %v2011
      %v2014 = vmul.f32 %v2012, 0.7978846
      %v2015 = vmul.f32 %v2013, 0.7978846
      %v2016 = vtanh.pop %v2014
      %v2017 = vtanh.pop %v2015
      %v2018 = vadd.f32 %v2016, 1.0
      %v2019 = vadd.f32 %v2017, 1.0
      %v2020 = vmul.f32 %v2004, %v2018
      %v2021 = vmul.f32 %v2005, %v2019
      %s2022 = scalar_lea.vmem %s14, 64
      %v2023 = vld [vmem:[%s2022] sm:$0xff]
      %v2024 = vld [vmem:[%s2022 + $0x8] sm:$0xff]
      %v2025 = vld [vmem:[%s2022 + $0x10] sm:$0xff]
      %v2026 = vld [vmem:[%s2022 + $0x18] sm:$0xff]
      %v2027 = vld [vmem:[%s2022 + $0x20] sm:$0xff]
      %v2028 = vld [vmem:[%s2022 + $0x28] sm:$0xff]
      %v2029 = vld [vmem:[%s2022 + $0x30] sm:$0xff]
      %v2030 = vld [vmem:[%s2022 + $0x38] sm:$0xff]
      %s2031 = scalar_lea.vmem %s15, 1
      %v2032 = vld [vmem:[%s2031] sm:$0x1]
      %v2034 = vperm.slane %v2032, 0
      %v2037 = vsel %vm1325, %v2020, 0
      %v2040 = vsel %vm1325, %v2021, 0
      %2042 = vmatpush.msra.mxu0 0.0
      %2043 = vmatpush.msra.mxu0 0.0
      %2044 = vmatpush.msra.mxu0 0.0
      %2045 = vmatpush.msra.mxu0 0.0
      %2046 = vmatpush.msra.mxu0 0.0
      %2047 = vmatpush.msra.mxu0 0.0
      %2048 = vmatpush.msra.mxu0 0.0
      %2049 = vmatpush.msra.mxu0 0.0
      %2050 = vmatpush.msra.mxu0 %v2030
      %2051 = vmatpush.msra.mxu0 %v2029
      %2052 = vmatpush.msra.mxu0 %v2028
      %2053 = vmatpush.msra.mxu0 %v2027
      %2054 = vmatpush.msra.mxu0 %v2026
      %2055 = vmatpush.msra.mxu0 %v2025
      %2056 = vmatpush.msra.mxu0 %v2024
      %2057 = vmatpush.msra.mxu0 %v2023
      %2058 = vmatmul.f32.gmra.mxu0 %v2037
      %v2059 = vpop.f32.mrf.mxu0
      %v2060 = vadd.f32 %v2034, %v2059
      %2061 = vmatmul.f32.gmra.mxu0 %v2040
      %v2062 = vpop.f32.mrf.mxu0
      %v2063 = vadd.f32 %v2034, %v2062
      %2064 = vdwg.mxu0
      %v2065 = vadd.f32 %v1905, %v2060
      %v2066 = vadd.f32 %v1906, %v2063
      %v2067 = vld [vmem:[%s16] sm:$0x1]
      %v2068 = vld [vmem:[%s17] sm:$0x1]
      %v2069 = vsel %vm649, %v2065, 0.0
      %2070 = vadd.xlane.f32.xlu0 %v2069
      %v2071 = vpop.xlane.xlu0 %2070
      %v2072 = vsel %vm649, %v2066, 0.0
      %2073 = vadd.xlane.f32.xlu0 %v2072
      %v2074 = vpop.xlane.xlu0 %2073
      %v2075 = vmul.f32 %v2071, %v662
      %v2076 = vmul.f32 %v2074, %v662
      %v2077 = vsub.f32 %v2065, %v2075
      %v2078 = vsub.f32 %v2066, %v2076
      %v2079 = vmul.f32 %v2077, %v2077
      %v2080 = vmul.f32 %v2078, %v2078
      %v2081 = vsel %vm649, %v2079, 0.0
      %2082 = vadd.xlane.f32.xlu0 %v2081
      %v2083 = vpop.xlane.xlu0 %2082
      %v2084 = vsel %vm649, %v2080, 0.0
      %2085 = vadd.xlane.f32.xlu0 %v2084
      %v2086 = vpop.xlane.xlu0 %2085
      %v2087 = vmul.f32 %v2083, %v662
      %v2088 = vmul.f32 %v2086, %v662
      %v2089 = vadd.f32 %v2087, 1e-05
      %v2090 = vadd.f32 %v2088, 1e-05
      %v2091 = vrsqrt.pop %v2089
      %v2092 = vmul.f32 %v2091, %v2089
      %v2093 = vmul.f32 %v2092, %v2091
      %v2094 = vmul.f32 0.5, %v2093
      %v2095 = vsub.f32 1.5, %v2094
      %v2096 = vmul.f32 %v2091, %v2095
      %vm2097 = vweird.f32 %v2089
      %vm2098 = vweird.f32 %v2091
      %vm2099 = vmor %vm2097, %vm2098
      %v2100 = vsel %vm2099, %v2091, %v2096
      %v2101 = vrsqrt.pop %v2090
      %v2102 = vmul.f32 %v2101, %v2090
      %v2103 = vmul.f32 %v2102, %v2101
      %v2104 = vmul.f32 0.5, %v2103
      %v2105 = vsub.f32 1.5, %v2104
      %v2106 = vmul.f32 %v2101, %v2105
      %vm2107 = vweird.f32 %v2090
      %vm2108 = vweird.f32 %v2101
      %vm2109 = vmor %vm2107, %vm2108
      %v2110 = vsel %vm2109, %v2101, %v2106
      %v2111 = vmul.f32 %v2077, %v2100
      %v2112 = vmul.f32 %v2078, %v2110
      %v2114 = vperm.slane %v2067, 0
      %v2116 = vmul.f32 %v2111, %v2114
      %v2117 = vmul.f32 %v2112, %v2114
      %v2119 = vperm.slane %v2068, 0
      %v2121 = vadd.f32 %v2116, %v2119
      %v2122 = vadd.f32 %v2117, %v2119
      %v2123 = vsel %vm649, %v2121, 0.0
      %v2124 = vsel %vm649, %v2122, 0.0
      %v2125 = vadd.f32 %v2123, %v2124
      %v2126 = vrot.slane %v2125, 4
      %v2127 = vadd.f32 %v2125, %v2126
      %v2128 = vrot.slane %v2127, 2
      %v2129 = vadd.f32 %v2127, %v2128
      %v2130 = vrot.slane %v2129, 1
      %v2131 = vadd.f32 %v2129, %v2130
      %v2132 = vrcp.pop 16.0
      %v2133 = vmul.f32 16.0, %v2132
      %v2134 = vsub.f32 1.0, %v2133
      %v2135 = vmul.f32 %v2132, %v2134
      %v2136 = vadd.f32 %v2132, %v2135
      %vm2137 = vweird.f32 %v2132
      %v2138 = vsel %vm2137, %v2132, %v2136
      %v2139 = vmul.f32 %v2131, %v2138
      %v2140 = vld [vmem:[%s18] sm:$0xff]
      %v2141 = vld [vmem:[%s18 + $0x8] sm:$0xff]
      %v2142 = vld [vmem:[%s18 + $0x10] sm:$0xff]
      %v2143 = vld [vmem:[%s18 + $0x18] sm:$0xff]
      %v2144 = vld [vmem:[%s18 + $0x20] sm:$0xff]
      %v2145 = vld [vmem:[%s18 + $0x28] sm:$0xff]
      %v2146 = vld [vmem:[%s18 + $0x30] sm:$0xff]
      %v2147 = vld [vmem:[%s18 + $0x38] sm:$0xff]
      %v2148 = vld [vmem:[%s18 + $0x40] sm:$0xff]
      %v2149 = vld [vmem:[%s18 + $0x48] sm:$0xff]
      %v2150 = vld [vmem:[%s18 + $0x50] sm:$0xff]
      %v2151 = vld [vmem:[%s18 + $0x58] sm:$0xff]
      %v2152 = vld [vmem:[%s18 + $0x60] sm:$0xff]
      %v2153 = vld [vmem:[%s18 + $0x68] sm:$0xff]
      %v2154 = vld [vmem:[%s18 + $0x70] sm:$0xff]
      %v2155 = vld [vmem:[%s18 + $0x78] sm:$0xff]
      %v2157 = vsel %vm649, %v2139, 0
      %2159 = vmatpush.msra.mxu0 0.0
      %2160 = vmatpush.msra.mxu0 0.0
      %2161 = vmatpush.msra.mxu0 0.0
      %2162 = vmatpush.msra.mxu0 0.0
      %2163 = vmatpush.msra.mxu0 0.0
      %2164 = vmatpush.msra.mxu0 0.0
      %2165 = vmatpush.msra.mxu0 0.0
      %2166 = vmatpush.msra.mxu0 0.0
      %2167 = vmatpush.msra.mxu0 0.0
      %2168 = vmatpush.msra.mxu0 0.0
      %2169 = vmatpush.msra.mxu0 0.0
      %2170 = vmatpush.msra.mxu0 0.0
      %2171 = vmatpush.msra.mxu0 %v2152
      %2172 = vmatpush.msra.mxu0 %v2148
      %2173 = vmatpush.msra.mxu0 %v2144
      %2174 = vmatpush.msra.mxu0 %v2140
      %2175 = vmatmul.f32.gmra.mxu0 %v2157
      %v2176 = vpop.f32.mrf.mxu0
      %v2177 = vadd.f32 0.0, %v2176
      %2178 = vdwg.mxu0
      %2179 = vmatpush.msra.mxu0 0.0
      %2180 = vmatpush.msra.mxu0 0.0
      %2181 = vmatpush.msra.mxu0 0.0
      %2182 = vmatpush.msra.mxu0 0.0
      %2183 = vmatpush.msra.mxu0 0.0
      %2184 = vmatpush.msra.mxu0 0.0
      %2185 = vmatpush.msra.mxu0 0.0
      %2186 = vmatpush.msra.mxu0 0.0
      %2187 = vmatpush.msra.mxu0 0.0
      %2188 = vmatpush.msra.mxu0 0.0
      %2189 = vmatpush.msra.mxu0 0.0
      %2190 = vmatpush.msra.mxu0 0.0
      %2191 = vmatpush.msra.mxu0 %v2153
      %2192 = vmatpush.msra.mxu0 %v2149
      %2193 = vmatpush.msra.mxu0 %v2145
      %2194 = vmatpush.msra.mxu0 %v2141
      %2195 = vmatmul.f32.gmra.mxu0 %v2157
      %v2196 = vpop.f32.mrf.mxu0
      %v2197 = vadd.f32 0.0, %v2196
      %2198 = vdwg.mxu0
      %2199 = vmatpush.msra.mxu0 0.0
      %2200 = vmatpush.msra.mxu0 0.0
      %2201 = vmatpush.msra.mxu0 0.0
      %2202 = vmatpush.msra.mxu0 0.0
      %2203 = vmatpush.msra.mxu0 0.0
      %2204 = vmatpush.msra.mxu0 0.0
      %2205 = vmatpush.msra.mxu0 0.0
      %2206 = vmatpush.msra.mxu0 0.0
      %2207 = vmatpush.msra.mxu0 0.0
      %2208 = vmatpush.msra.mxu0 0.0
      %2209 = vmatpush.msra.mxu0 0.0
      %2210 = vmatpush.msra.mxu0 0.0
      %2211 = vmatpush.msra.mxu0 %v2154
      %2212 = vmatpush.msra.mxu0 %v2150
      %2213 = vmatpush.msra.mxu0 %v2146
      %2214 = vmatpush.msra.mxu0 %v2142
      %2215 = vmatmul.f32.gmra.mxu0 %v2157
      %v2216 = vpop.f32.mrf.mxu0
      %v2217 = vadd.f32 0.0, %v2216
      %2218 = vdwg.mxu0
      %2219 = vmatpush.msra.mxu0 0.0
      %2220 = vmatpush.msra.mxu0 0.0
      %2221 = vmatpush.msra.mxu0 0.0
      %2222 = vmatpush.msra.mxu0 0.0
      %2223 = vmatpush.msra.mxu0 0.0
      %2224 = vmatpush.msra.mxu0 0.0
      %2225 = vmatpush.msra.mxu0 0.0
      %2226 = vmatpush.msra.mxu0 0.0
      %2227 = vmatpush.msra.mxu0 0.0
      %2228 = vmatpush.msra.mxu0 0.0
      %2229 = vmatpush.msra.mxu0 0.0
      %2230 = vmatpush.msra.mxu0 0.0
      %2231 = vmatpush.msra.mxu0 %v2155
      %2232 = vmatpush.msra.mxu0 %v2151
      %2233 = vmatpush.msra.mxu0 %v2147
      %2234 = vmatpush.msra.mxu0 %v2143
      %2235 = vmatmul.f32.gmra.mxu0 %v2157
      %v2236 = vpop.f32.mrf.mxu0
      %v2237 = vadd.f32 0.0, %v2236
      %2238 = vdwg.mxu0
      %v2243 = vrot.slane %v2197, 7
      %v2244 = vrot.slane %v2217, 6
      %v2245 = vrot.slane %v2237, 5
      %vm2246 = vcmask 1040384
      %v2247 = vsel %vm2246, %v2177, %v2243
      %vm2248 = vcmask 1042434
      %v2249 = vsel %vm2248, %v2244, %v2245
      %vm2250 = vcmask 1041408
      %v2251 = vsel %vm2250, %v2247, %v2249
      %v2253 = vlaneseq
      %vm2254 = vcmp.ge.s32.totalorder %v2253, 0
      %vm2255 = vcmp.lt.s32.totalorder %v2253, 512
      %vm2256 = vmand %vm2254, %vm2255
      %2257 = vst.msk [vmem:[%s600] sm:$0xf] %vm2256, %v2251
      %p2258 = scmp.lt.s32.totalorder %s30, 1
      %s2259 = scalar_select %p2258, %s30, 1
      %s2260 = smul.addr %s2259, 4
      %s2261 = scalar_lea.vmem %s19, %s2260
      // Predicated region
      $region97: #{medclip_forward.1} parent=95 // pred_check
        %p2262 = pneg %p452
      $region98: #{medclip_forward.1} parent=95 // pred_check_branch
        %2264 = sbr.rel (%p2262) target = $region100
      $region99: #{medclip_forward.1} parent=95 // pred_region
        _
      $region100: #{medclip_forward.1} parent=95 // pred_fallthru
        _
    $region96: #{medclip_forward.1} parent=5 // pred_fallthru
      _
    %p2265 = scmp.le.s32.totalorder 2, %s25
    // Predicated region
    $region101: #{medclip_forward.1} parent=5 // pred_check
      %p2266 = pneg %p2265
    $region102: #{medclip_forward.1} parent=5 // pred_check_branch
      %2268 = sbr.rel (%p2266) target = $region104
    $region103: #{medclip_forward.1} parent=5 // pred_region
      %s2269 = ssub.s32 %s25, 2
      // Predicated region
      $region105: #{medclip_forward.1} parent=103 // pred_check
        %p2270 = pneg %p458
      $region106: #{medclip_forward.1} parent=103 // pred_check_branch
        %2272 = sbr.rel (%p2270) target = $region108
      $region107: #{medclip_forward.1} parent=103 // pred_region
        %p2273 = scmp.lt.s32.totalorder %s31, 1
        %s2274 = scalar_select %p2273, %s31, 1
        %s2275 = smul.addr %s2274, 4
        %s2276 = scalar_lea.vmem %s19, %s2275
      $region108: #{medclip_forward.1} parent=103 // pred_fallthru
        _
    $region104: #{medclip_forward.1} parent=5 // pred_fallthru
      _
  $region6: #{medclip_forward.1} parent=0 // loop_footer
    %s29 = sadd.s32 1, %s25
  $region7: #{medclip_forward.1} parent=0 // loop_footer_branch
    %24 = sbr.rel target = $region3
  $region8: #{medclip_forward.1} parent=0 // loop_exit
    _

</llo_original>
